<compile_context>
chip_gen: v7x
topology: tpu7x:2x2x1
jax: 0.10.0
libtpu: 0.0.40
codegen_flags: <defaults>
</compile_context>

<pallas_src>
import jax
import jax.numpy as jnp
from jax.experimental import pallas as pl
from jax.experimental.pallas import tpu as pltpu

EPS = 1e-3


def _bn_kernel(x_ref, w_ref, b_ref, o_ref):
    # x_ref: (N, BLOCK_C, HW) -- one tile of channels, full batch+spatial axes.
    n_elems = x_ref.shape[0] * x_ref.shape[2]
    inv_n = 1.0 / n_elems

    # ---- sweep 1: single-pass batch statistics over (N, H*W) -------------
    x = x_ref[...].astype(jnp.float32)                 # live only for the sums
    s1 = jnp.sum(x, axis=(0, 2), keepdims=True)        # (1, BLOCK_C, 1)
    s2 = jnp.sum(x * x, axis=(0, 2), keepdims=True)    # (1, BLOCK_C, 1)
    mean = s1 * inv_n
    # clamp: E[x^2] - E[x]^2 can dip slightly negative from cancellation
    var = jnp.maximum(s2 * inv_n - mean * mean, 0.0)   # biased variance
    inv_std = jax.lax.rsqrt(var + EPS)

    # fold affine into per-channel scale/shift: y = x*scale + shift
    w = w_ref[...].astype(jnp.float32)                 # (1, BLOCK_C, 1)
    b = b_ref[...].astype(jnp.float32)                 # (1, BLOCK_C, 1)
    scale = inv_std * w
    shift = b - mean * scale

    # ---- sweep 2: output fma, re-reading the VMEM input buffer -----------
    o_ref[...] = (x_ref[...].astype(jnp.float32) * scale + shift).astype(o_ref.dtype)


def _pick_block_c(C, N, HW, itemsize, vmem_budget_bytes=8 << 20):
    """Largest divisor of C that is a multiple of 8, gives grid >= 2, and fits
    the per-block VMEM budget (input + output, each double-buffered)."""

    def block_bytes(bc):
        return 4 * N * bc * HW * itemsize  # 2 buffers in, 2 buffers out

    divisors = [d for d in range(1, C + 1) if C % d == 0]
    # preferred: multiple of 8, at least 2 grid steps, fits VMEM budget
    good = [d for d in divisors
            if d % 8 == 0 and C // d >= 2 and block_bytes(d) <= vmem_budget_bytes]
    if good:
        return max(good)
    # fallback: anything that fits (may be grid=1 for tiny C)
    ok = [d for d in divisors if block_bytes(d) <= vmem_budget_bytes]
    if ok:
        return max(ok)
    # last resort: smallest divisor (kernel needs the full N*HW extent per block)
    return min(divisors)


def batchnorm2d_pallas(x_nchw, weight, bias):
    N, C, H, W = x_nchw.shape
    HW = H * W
    itemsize = jnp.dtype(x_nchw.dtype).itemsize
    block_c = _pick_block_c(C, N, HW, itemsize)
    grid_c = C // block_c

    # free reshapes -- no transposes, no extra HBM passes
    x3 = x_nchw.reshape(N, C, HW)
    w3 = weight.reshape(1, C, 1)
    b3 = bias.reshape(1, C, 1)

    total = N * C * HW
    cost = pl.CostEstimate(
        flops=5 * total,                 # x*x, 2 sums, fma on the output sweep
        transcendentals=C,               # rsqrt per channel
        bytes_accessed=2 * total * itemsize,
    )

    out3 = pl.pallas_call(
        _bn_kernel,
        out_shape=jax.ShapeDtypeStruct((N, C, HW), x_nchw.dtype),
        grid_spec=pltpu.PrefetchScalarGridSpec(
            num_scalar_prefetch=0,
            grid=(grid_c,),
            in_specs=[
                pl.BlockSpec((N, block_c, HW), lambda i: (0, i, 0)),
                pl.BlockSpec((1, block_c, 1), lambda i: (0, i, 0)),
                pl.BlockSpec((1, block_c, 1), lambda i: (0, i, 0)),
            ],
            out_specs=pl.BlockSpec((N, block_c, HW), lambda i: (0, i, 0)),
        ),
        compiler_params=pltpu.CompilerParams(
            dimension_semantics=("parallel",),
        ),
        cost_estimate=cost,
    )(x3, w3, b3)

    return out3.reshape(N, C, H, W)


def batchnorm2d_ref(x_nchw, weight, bias):
    # pure-JAX reference of PyTorch BatchNorm2d in training mode
    mean = jnp.mean(x_nchw, axis=(0, 2, 3), keepdims=True)
    var = jnp.mean((x_nchw - mean) ** 2, axis=(0, 2, 3), keepdims=True)  # biased (matches PyTorch training-mode normalization)
    w = weight.reshape(1, -1, 1, 1)
    b = bias.reshape(1, -1, 1, 1)
    return (x_nchw - mean) * jax.lax.rsqrt(var + EPS) * w + b


if __name__ == "__main__":
    key = jax.random.PRNGKey(0)
    kx, kw, kb = jax.random.split(key, 3)

    N, C, H, W = 1, 480, 28, 28  # matches the module's expected input
    x = jax.random.normal(kx, (N, C, H, W), dtype=jnp.float32)
    # PyTorch init is weight=1, bias=0; use deterministic random affine so the
    # affine path is exercised non-trivially (synthetic kernel, no checkpoint).
    weight = 1.0 + 0.1 * jax.random.normal(kw, (C,), dtype=jnp.float32)
    bias = 0.1 * jax.random.normal(kb, (C,), dtype=jnp.float32)

    # TODO(synk): running_mean/running_var update (momentum=0.01) is a training
    # side effect not reflected in the forward output, so it is not implemented.
    out = batchnorm2d_pallas(x, weight, bias)
    out = jax.block_until_ready(out)

    ref = batchnorm2d_ref(x, weight, bias)
    assert out.shape == (N, C, H, W)
    assert jnp.allclose(out, ref, atol=1e-4, rtol=1e-4), "mismatch vs reference"

    print("KERNEL_OK")
</pallas_src>

<mosaic_0001>
module attributes {stable_mosaic.version = 11 : i64} {
  func.func @_bn_kernel(%arg0: i32, %arg1: memref<1x240x784xf32, #tpu.memory_space<vmem>>, %arg2: memref<1x240x1xf32, #tpu.memory_space<vmem>>, %arg3: memref<1x240x1xf32, #tpu.memory_space<vmem>>, %arg4: memref<1x240x784xf32, #tpu.memory_space<vmem>>) attributes {dimension_semantics = [#tpu.dimension_semantics<parallel>], iteration_bounds = array<i64: 2>, scalar_prefetch = 0 : i64, scratch_operands = 0 : i64, tpu.core_type = #tpu.core_type<tc>, window_params = [{transform_indices = @transform_0, window_bounds = array<i64: 1, 240, 784>}, {transform_indices = @transform_1, window_bounds = array<i64: 1, 240, 1>}, {transform_indices = @transform_2, window_bounds = array<i64: 1, 240, 1>}, {transform_indices = @transform_3, window_bounds = array<i64: 1, 240, 784>}]} {
    %c0 = arith.constant 0 : index
    %c0_0 = arith.constant 0 : index
    %c0_1 = arith.constant 0 : index
    %0 = vector.load %arg1[%c0, %c0_0, %c0_1] : memref<1x240x784xf32, #tpu.memory_space<vmem>>, vector<1x240x784xf32>
    %cst = arith.constant dense<0.000000e+00> : vector<240xf32>
    %1 = vector.multi_reduction <add>, %0, %cst [0, 2] : vector<1x240x784xf32> to vector<240xf32>
    %2 = vector.shape_cast %1 : vector<240xf32> to vector<1x240x1xf32>
    %3 = arith.mulf %0, %0 : vector<1x240x784xf32>
    %cst_2 = arith.constant dense<0.000000e+00> : vector<240xf32>
    %4 = vector.multi_reduction <add>, %3, %cst_2 [0, 2] : vector<1x240x784xf32> to vector<240xf32>
    %5 = vector.shape_cast %4 : vector<240xf32> to vector<1x240x1xf32>
    %cst_3 = arith.constant 0.00127551018 : f32
    %6 = vector.broadcast %cst_3 : f32 to vector<1x240x1xf32>
    %7 = arith.mulf %2, %6 : vector<1x240x1xf32>
    %cst_4 = arith.constant 0.00127551018 : f32
    %8 = vector.broadcast %cst_4 : f32 to vector<1x240x1xf32>
    %9 = arith.mulf %5, %8 : vector<1x240x1xf32>
    %10 = arith.mulf %7, %7 : vector<1x240x1xf32>
    %11 = arith.subf %9, %10 : vector<1x240x1xf32>
    %cst_5 = arith.constant 0.000000e+00 : f32
    %12 = vector.broadcast %cst_5 : f32 to vector<1x240x1xf32>
    %13 = arith.maximumf %11, %12 : vector<1x240x1xf32>
    %cst_6 = arith.constant 1.000000e-03 : f32
    %14 = vector.broadcast %cst_6 : f32 to vector<1x240x1xf32>
    %15 = arith.addf %13, %14 : vector<1x240x1xf32>
    %16 = math.rsqrt %15 : vector<1x240x1xf32>
    %c0_7 = arith.constant 0 : index
    %c0_8 = arith.constant 0 : index
    %c0_9 = arith.constant 0 : index
    %17 = vector.load %arg2[%c0_7, %c0_8, %c0_9] : memref<1x240x1xf32, #tpu.memory_space<vmem>>, vector<1x240x1xf32>
    %c0_10 = arith.constant 0 : index
    %c0_11 = arith.constant 0 : index
    %c0_12 = arith.constant 0 : index
    %18 = vector.load %arg3[%c0_10, %c0_11, %c0_12] : memref<1x240x1xf32, #tpu.memory_space<vmem>>, vector<1x240x1xf32>
    %19 = arith.mulf %16, %17 : vector<1x240x1xf32>
    %20 = arith.mulf %7, %19 : vector<1x240x1xf32>
    %21 = arith.subf %18, %20 : vector<1x240x1xf32>
    %c0_13 = arith.constant 0 : index
    %c0_14 = arith.constant 0 : index
    %c0_15 = arith.constant 0 : index
    %22 = vector.load %arg1[%c0_13, %c0_14, %c0_15] : memref<1x240x784xf32, #tpu.memory_space<vmem>>, vector<1x240x784xf32>
    %23 = vector.broadcast %19 : vector<1x240x1xf32> to vector<1x240x784xf32>
    %24 = arith.mulf %22, %23 : vector<1x240x784xf32>
    %25 = vector.broadcast %21 : vector<1x240x1xf32> to vector<1x240x784xf32>
    %26 = arith.addf %24, %25 : vector<1x240x784xf32>
    %c0_16 = arith.constant 0 : index
    %c0_17 = arith.constant 0 : index
    %c0_18 = arith.constant 0 : index
    %27 = vector.load %arg4[%c0_16, %c0_17, %c0_18] : memref<1x240x784xf32, #tpu.memory_space<vmem>>, vector<1x240x784xf32>
    tpu.vector_store %arg4[%c0_16, %c0_17, %c0_18], %26 {strides = array<i32>} : memref<1x240x784xf32, #tpu.memory_space<vmem>>, vector<1x240x784xf32>,
    return
  }
  func.func @transform_0(%arg0: i32) -> (i32, i32, i32) {
    %c0_i32 = arith.constant 0 : i32
    %c0_i32_0 = arith.constant 0 : i32
    %c0_i32_1 = arith.constant 0 : i32
    return %c0_i32, %arg0, %c0_i32_0 : i32, i32, i32
  }
  func.func @transform_1(%arg0: i32) -> (i32, i32, i32) {
    %c0_i32 = arith.constant 0 : i32
    %c0_i32_0 = arith.constant 0 : i32
    %c0_i32_1 = arith.constant 0 : i32
    return %c0_i32, %arg0, %c0_i32_0 : i32, i32, i32
  }
  func.func @transform_2(%arg0: i32) -> (i32, i32, i32) {
    %c0_i32 = arith.constant 0 : i32
    %c0_i32_0 = arith.constant 0 : i32
    %c0_i32_1 = arith.constant 0 : i32
    return %c0_i32, %arg0, %c0_i32_0 : i32, i32, i32
  }
  func.func @transform_3(%arg0: i32) -> (i32, i32, i32) {
    %c0_i32 = arith.constant 0 : i32
    %c0_i32_0 = arith.constant 0 : i32
    %c0_i32_1 = arith.constant 0 : i32
    return %c0_i32, %arg0, %c0_i32_0 : i32, i32, i32
  }
}

</mosaic_0001>

<llo_original>
// kernel: tpu_custom_call.1
$region0: #{tpu_custom_call.1}
  #allocation0 [shape = 'u32[]', space=smem, size = 0x4, offset = 0x4, fixed_abs, tag = 'smem constant byte address 0x4 - core index']
  #allocation1 [shape = 'u32[144,128]{1,0:T(1,128)}', space=vmem, size = 0x12000, scoped, tag = 'internal scratch']
  %s0 = inlined_call_operand.vmem [shape: f32[1,480,784], index: 0, kind: input, shape index: {}]
  %s1 = inlined_call_operand.vmem [shape: f32[1,480,1], index: 1, kind: input, shape index: {}]
  %s2 = inlined_call_operand.vmem [shape: f32[1,480,1], index: 2, kind: input, shape index: {}]
  %s3 = inlined_call_operand.vmem [shape: f32[1,480,784], index: 3, kind: output, shape index: {}]
  %s4 = sld [smem:[#allocation0]]
  $region45: #{tpu_custom_call.1} parent=0
    _
  %s6 = ssub.s32 1, %s4
  %s7 = scalar_select 0, %s6, %s4
  loop: start=0, step=1, limit=4
  $region2: #{tpu_custom_call.1} parent=0 // loop_pre_header
    _
  $region3: #{tpu_custom_call.1} parent=0 // loop_header
    %s9 = sphi 0, %s13
    %p10 = scmp.ge.s32.totalorder %s9, 4
    %s19 = sphi 0, %s21
    %s22 = sphi 0, %s19
    %s23 = sphi 0, %s22
    %s39 = sphi 0, %s23
    %s45 = sphi 0, %s47
    %s48 = sphi 0, %s45
    %s49 = sphi 0, %s48
    %s65 = sphi 0, %s49
    %s71 = sphi 0, %s73
    %s74 = sphi 0, %s71
    %s75 = sphi 0, %s74
    %s91 = sphi 0, %s75
    %s97 = sphi 0, %s99
    %s100 = sphi 0, %s97
    %s101 = sphi 0, %s100
    %s117 = sphi 0, %s101
  $region4: #{tpu_custom_call.1} parent=0 // loop_header_branch
    %12 = sbr.rel (%p10) target = $region8
  $region5: #{tpu_custom_call.1} parent=0 // loop_body
    %s14 = ssub.s32 %s9, 1
    %s15 = ssub.s32 %s9, 2
    %s16 = sadd.s32 %s9, 1
    %s17 = ssub.s32 %s9, %s16
    %p18 = scmp.eq.s32.totalorder %s17, 0
    %s20 = sadd.s32 %s19, 1
    %s21 = scalar_select %p18, %s19, %s20
    %p24 = pneg %p18
    %p25 = scmp.eq.s32.totalorder %s9, 1
    %p26 = por %p24, %p25
    %p27 = scmp.ne.s32.totalorder %s19, %s22
    %p28 = scmp.eq.s32.totalorder %s9, 0
    %p29 = por %p27, %p28
    %p30 = scmp.ne.s32.totalorder %s19, %s22
    %p31 = scmp.eq.s32.totalorder %s14, 1
    %p32 = por %p30, %p31
    %p33 = scmp.ne.s32.totalorder %s22, %s23
    %p34 = scmp.eq.s32.totalorder %s14, 0
    %p35 = por %p33, %p34
    %p36 = scmp.ne.s32.totalorder %s22, %s23
    %p37 = scmp.eq.s32.totalorder %s15, 1
    %p38 = por %p36, %p37
    %p40 = scmp.ne.s32.totalorder %s23, %s39
    %p41 = scmp.eq.s32.totalorder %s15, 0
    %p42 = por %p40, %p41
    %s43 = ssub.s32 %s9, %s16
    %p44 = scmp.eq.s32.totalorder %s43, 0
    %s46 = sadd.s32 %s45, 1
    %s47 = scalar_select %p44, %s45, %s46
    %p50 = pneg %p44
    %p51 = scmp.eq.s32.totalorder %s9, 1
    %p52 = por %p50, %p51
    %p53 = scmp.ne.s32.totalorder %s45, %s48
    %p54 = scmp.eq.s32.totalorder %s9, 0
    %p55 = por %p53, %p54
    %p56 = scmp.ne.s32.totalorder %s45, %s48
    %p57 = scmp.eq.s32.totalorder %s14, 1
    %p58 = por %p56, %p57
    %p59 = scmp.ne.s32.totalorder %s48, %s49
    %p60 = scmp.eq.s32.totalorder %s14, 0
    %p61 = por %p59, %p60
    %p62 = scmp.ne.s32.totalorder %s48, %s49
    %p63 = scmp.eq.s32.totalorder %s15, 1
    %p64 = por %p62, %p63
    %p66 = scmp.ne.s32.totalorder %s49, %s65
    %p67 = scmp.eq.s32.totalorder %s15, 0
    %p68 = por %p66, %p67
    %s69 = ssub.s32 %s9, %s16
    %p70 = scmp.eq.s32.totalorder %s69, 0
    %s72 = sadd.s32 %s71, 1
    %s73 = scalar_select %p70, %s71, %s72
    %p76 = pneg %p70
    %p77 = scmp.eq.s32.totalorder %s9, 1
    %p78 = por %p76, %p77
    %p79 = scmp.ne.s32.totalorder %s71, %s74
    %p80 = scmp.eq.s32.totalorder %s9, 0
    %p81 = por %p79, %p80
    %p82 = scmp.ne.s32.totalorder %s71, %s74
    %p83 = scmp.eq.s32.totalorder %s14, 1
    %p84 = por %p82, %p83
    %p85 = scmp.ne.s32.totalorder %s74, %s75
    %p86 = scmp.eq.s32.totalorder %s14, 0
    %p87 = por %p85, %p86
    %p88 = scmp.ne.s32.totalorder %s74, %s75
    %p89 = scmp.eq.s32.totalorder %s15, 1
    %p90 = por %p88, %p89
    %p92 = scmp.ne.s32.totalorder %s75, %s91
    %p93 = scmp.eq.s32.totalorder %s15, 0
    %p94 = por %p92, %p93
    %s95 = ssub.s32 %s9, %s16
    %p96 = scmp.eq.s32.totalorder %s95, 0
    %s98 = sadd.s32 %s97, 1
    %s99 = scalar_select %p96, %s97, %s98
    %p102 = pneg %p96
    %p103 = scmp.eq.s32.totalorder %s9, 1
    %p104 = por %p102, %p103
    %p105 = scmp.ne.s32.totalorder %s97, %s100
    %p106 = scmp.eq.s32.totalorder %s9, 0
    %p107 = por %p105, %p106
    %p108 = scmp.ne.s32.totalorder %s97, %s100
    %p109 = scmp.eq.s32.totalorder %s14, 1
    %p110 = por %p108, %p109
    %p111 = scmp.ne.s32.totalorder %s100, %s101
    %p112 = scmp.eq.s32.totalorder %s14, 0
    %p113 = por %p111, %p112
    %p114 = scmp.ne.s32.totalorder %s100, %s101
    %p115 = scmp.eq.s32.totalorder %s15, 1
    %p116 = por %p114, %p115
    %p118 = scmp.ne.s32.totalorder %s101, %s117
    %p119 = scmp.eq.s32.totalorder %s15, 0
    %p120 = por %p118, %p119
    %p121 = scmp.le.s32.totalorder 1, %s9
    %p122 = scmp.lt.s32.totalorder %s9, 3
    %p123 = pnand %p121, %p122
    %p124 = pneg %p123
    // Predicated region
    $region9: #{tpu_custom_call.1} parent=5 // pred_check
      _
    $region10: #{tpu_custom_call.1} parent=5 // pred_check_branch
      %126 = sbr.rel (%p123) target = $region12
    $region11: #{tpu_custom_call.1} parent=5 // pred_region
      %s127 = ssub.s32 %s9, 1
    $region12: #{tpu_custom_call.1} parent=5 // pred_fallthru
      _
    %p128 = scmp.lt.s32.totalorder %s9, 2
    // Predicated region
    $region13: #{tpu_custom_call.1} parent=5 // pred_check
      %p129 = pneg %p128
    $region14: #{tpu_custom_call.1} parent=5 // pred_check_branch
      %131 = sbr.rel (%p129) target = $region16
    $region15: #{tpu_custom_call.1} parent=5 // pred_region
      // Predicated region
      $region17: #{tpu_custom_call.1} parent=15 // pred_check
        %p132 = pneg %p29
      $region18: #{tpu_custom_call.1} parent=15 // pred_check_branch
        %134 = sbr.rel (%p132) target = $region20
      $region19: #{tpu_custom_call.1} parent=15 // pred_region
        %s135 = smul.u32 30, %s9
        %p136 = scmp.lt.s32.totalorder %s135, 59
        %s137 = scalar_select %p136, %s135, 59
        %s138 = smul.addr %s137, 7
        %s139 = smul.addr %s138, 8
        %s140 = scalar_lea.vmem %s0, %s139
        %s141 = smul.u32 30, %s9
      $region20: #{tpu_custom_call.1} parent=15 // pred_fallthru
        _
      // Predicated region
      $region21: #{tpu_custom_call.1} parent=15 // pred_check
        %p142 = pneg %p55
      $region22: #{tpu_custom_call.1} parent=15 // pred_check_branch
        %144 = sbr.rel (%p142) target = $region24
      $region23: #{tpu_custom_call.1} parent=15 // pred_region
        %s145 = smul.u32 30, %s9
        %p146 = scmp.lt.s32.totalorder %s145, 59
        %s147 = scalar_select %p146, %s145, 59
        %s148 = smul.addr %s147, 8
        %s149 = scalar_lea.vmem %s1, %s148
        %s150 = smul.u32 30, %s9
      $region24: #{tpu_custom_call.1} parent=15 // pred_fallthru
        _
      // Predicated region
      $region25: #{tpu_custom_call.1} parent=15 // pred_check
        %p151 = pneg %p81
      $region26: #{tpu_custom_call.1} parent=15 // pred_check_branch
        %153 = sbr.rel (%p151) target = $region28
      $region27: #{tpu_custom_call.1} parent=15 // pred_region
        %s154 = smul.u32 30, %s9
        %p155 = scmp.lt.s32.totalorder %s154, 59
        %s156 = scalar_select %p155, %s154, 59
        %s157 = smul.addr %s156, 8
        %s158 = scalar_lea.vmem %s2, %s157
        %s159 = smul.u32 30, %s9
      $region28: #{tpu_custom_call.1} parent=15 // pred_fallthru
        _
    $region16: #{tpu_custom_call.1} parent=5 // pred_fallthru
      _
    %p160 = scmp.le.s32.totalorder 1, %s9
    %p161 = scmp.lt.s32.totalorder %s9, 3
    %p162 = pnand %p160, %p161
    %p163 = pneg %p162
    // Predicated region
    $region29: #{tpu_custom_call.1} parent=5 // pred_check
      _
    $region30: #{tpu_custom_call.1} parent=5 // pred_check_branch
      %165 = sbr.rel (%p162) target = $region32
    $region31: #{tpu_custom_call.1} parent=5 // pred_region
      %s166 = ssub.s32 %s9, 1
      %s167 = smul.u32 30, %s14
      %p168 = scmp.lt.s32.totalorder %s167, 59
      %s169 = scalar_select %p168, %s167, 59
      %s170 = smul.addr %s169, 7
      %s171 = smul.addr %s170, 8
      %s172 = scalar_lea.vmem %s0, %s171
      %p173 = pneg %p35
      %p174 = pneg %p32
      %s175 = smul.u32 30, %s14
      %p176 = scmp.lt.s32.totalorder %s175, 59
      %s177 = scalar_select %p176, %s175, 59
      %s178 = smul.addr %s177, 8
      %s179 = scalar_lea.vmem %s1, %s178
      %p180 = pneg %p61
      %p181 = pneg %p58
      %s182 = smul.u32 30, %s14
      %p183 = scmp.lt.s32.totalorder %s182, 59
      %s184 = scalar_select %p183, %s182, 59
      %s185 = smul.addr %s184, 8
      %s186 = scalar_lea.vmem %s2, %s185
      %p187 = pneg %p87
      %p188 = pneg %p84
      %p189 = pneg %p113
      %p190 = pneg %p110
      %s191 = smul.u32 30, %s14
      %p192 = scmp.lt.s32.totalorder %s191, 59
      %s193 = scalar_select %p192, %s191, 59
      %s194 = smul.addr %s193, 7
      %s195 = smul.addr %s194, 8
      %s196 = scalar_lea.vmem %s3, %s195
      %s197 = smul.u32 30, %s14
      %p198 = scmp.lt.s32.totalorder %s197, 59
      %s199 = scalar_select %p198, %s197, 59
      %s200 = smul.addr %s199, 7
      %s201 = smul.addr %s200, 8
      %s202 = scalar_lea.vmem %s0, %s201
      %s203 = smul.u32 30, %s14
      %s204 = smul.u32 30, %s14
      %p205 = scmp.lt.s32.totalorder %s204, 59
      %s206 = scalar_select %p205, %s204, 59
      %s207 = smul.addr %s206, 8
      %s208 = scalar_lea.vmem %s1, %s207
      %s209 = smul.u32 30, %s14
      %s210 = smul.u32 30, %s14
      %p211 = scmp.lt.s32.totalorder %s210, 59
      %s212 = scalar_select %p211, %s210, 59
      %s213 = smul.addr %s212, 8
      %s214 = scalar_lea.vmem %s2, %s213
      %s215 = smul.u32 30, %s14
      %s216 = smul.u32 30, %s14
      %p217 = scmp.lt.s32.totalorder %s216, 59
      %s218 = scalar_select %p217, %s216, 59
      %s219 = smul.addr %s218, 7
      %s220 = smul.addr %s219, 8
      %s221 = scalar_lea.vmem %s3, %s220
      %s222 = smul.u32 30, %s14
      %v223 = vld [vmem:[%s202] sm:$0xff]
      %v224 = vld [vmem:[%s202 + $0x8] sm:$0xff]
      %v225 = vld [vmem:[%s202 + $0x10] sm:$0xff]
      %v226 = vld [vmem:[%s202 + $0x18] sm:$0xff]
      %v227 = vld [vmem:[%s202 + $0x20] sm:$0xff]
      %v228 = vld [vmem:[%s202 + $0x28] sm:$0xff]
      %v229 = vld [vmem:[%s202 + $0x30] sm:$0xff]
      %v230 = vld [vmem:[%s202 + $0x38] sm:$0xff]
      %v231 = vld [vmem:[%s202 + $0x40] sm:$0xff]
      %v232 = vld [vmem:[%s202 + $0x48] sm:$0xff]
      %v233 = vld [vmem:[%s202 + $0x50] sm:$0xff]
      %v234 = vld [vmem:[%s202 + $0x58] sm:$0xff]
      %v235 = vld [vmem:[%s202 + $0x60] sm:$0xff]
      %v236 = vld [vmem:[%s202 + $0x68] sm:$0xff]
      %v237 = vld [vmem:[%s202 + $0x70] sm:$0xff]
      %v238 = vld [vmem:[%s202 + $0x78] sm:$0xff]
      %v239 = vld [vmem:[%s202 + $0x80] sm:$0xff]
      %v240 = vld [vmem:[%s202 + $0x88] sm:$0xff]
      %v241 = vld [vmem:[%s202 + $0x90] sm:$0xff]
      %v242 = vld [vmem:[%s202 + $0x98] sm:$0xff]
      %v243 = vld [vmem:[%s202 + $0xa0] sm:$0xff]
      %v244 = vld [vmem:[%s202 + $0xa8] sm:$0xff]
      %v245 = vld [vmem:[%s202 + $0xb0] sm:$0xff]
      %v246 = vld [vmem:[%s202 + $0xb8] sm:$0xff]
      %v247 = vld [vmem:[%s202 + $0xc0] sm:$0xff]
      %v248 = vld [vmem:[%s202 + $0xc8] sm:$0xff]
      %v249 = vld [vmem:[%s202 + $0xd0] sm:$0xff]
      %v250 = vld [vmem:[%s202 + $0xd8] sm:$0xff]
      %v251 = vld [vmem:[%s202 + $0xe0] sm:$0xff]
      %v252 = vld [vmem:[%s202 + $0xe8] sm:$0xff]
      %v253 = vld [vmem:[%s202 + $0xf0] sm:$0xff]
      %v254 = vld [vmem:[%s202 + $0xf8] sm:$0xff]
      %v255 = vld [vmem:[%s202 + $0x100] sm:$0xff]
      %v256 = vld [vmem:[%s202 + $0x108] sm:$0xff]
      %v257 = vld [vmem:[%s202 + $0x110] sm:$0xff]
      %v258 = vld [vmem:[%s202 + $0x118] sm:$0xff]
      %v259 = vld [vmem:[%s202 + $0x120] sm:$0xff]
      %v260 = vld [vmem:[%s202 + $0x128] sm:$0xff]
      %v261 = vld [vmem:[%s202 + $0x130] sm:$0xff]
      %v262 = vld [vmem:[%s202 + $0x138] sm:$0xff]
      %v263 = vld [vmem:[%s202 + $0x140] sm:$0xff]
      %v264 = vld [vmem:[%s202 + $0x148] sm:$0xff]
      %v265 = vld [vmem:[%s202 + $0x150] sm:$0xff]
      %v266 = vld [vmem:[%s202 + $0x158] sm:$0xff]
      %v267 = vld [vmem:[%s202 + $0x160] sm:$0xff]
      %v268 = vld [vmem:[%s202 + $0x168] sm:$0xff]
      %v269 = vld [vmem:[%s202 + $0x170] sm:$0xff]
      %v270 = vld [vmem:[%s202 + $0x178] sm:$0xff]
      %v271 = vld [vmem:[%s202 + $0x180] sm:$0xff]
      %v272 = vld [vmem:[%s202 + $0x188] sm:$0xff]
      %v273 = vld [vmem:[%s202 + $0x190] sm:$0xff]
      %v274 = vld [vmem:[%s202 + $0x198] sm:$0xff]
      %v275 = vld [vmem:[%s202 + $0x1a0] sm:$0xff]
      %v276 = vld [vmem:[%s202 + $0x1a8] sm:$0xff]
      %v277 = vld [vmem:[%s202 + $0x1b0] sm:$0xff]
      %v278 = vld [vmem:[%s202 + $0x1b8] sm:$0xff]
      %v279 = vld [vmem:[%s202 + $0x1c0] sm:$0xff]
      %v280 = vld [vmem:[%s202 + $0x1c8] sm:$0xff]
      %v281 = vld [vmem:[%s202 + $0x1d0] sm:$0xff]
      %v282 = vld [vmem:[%s202 + $0x1d8] sm:$0xff]
      %v283 = vld [vmem:[%s202 + $0x1e0] sm:$0xff]
      %v284 = vld [vmem:[%s202 + $0x1e8] sm:$0xff]
      %v285 = vld [vmem:[%s202 + $0x1f0] sm:$0xff]
      %v286 = vld [vmem:[%s202 + $0x1f8] sm:$0xff]
      %v287 = vld [vmem:[%s202 + $0x200] sm:$0xff]
      %v288 = vld [vmem:[%s202 + $0x208] sm:$0xff]
      %v289 = vld [vmem:[%s202 + $0x210] sm:$0xff]
      %v290 = vld [vmem:[%s202 + $0x218] sm:$0xff]
      %v291 = vld [vmem:[%s202 + $0x220] sm:$0xff]
      %v292 = vld [vmem:[%s202 + $0x228] sm:$0xff]
      %v293 = vld [vmem:[%s202 + $0x230] sm:$0xff]
      %v294 = vld [vmem:[%s202 + $0x238] sm:$0xff]
      %v295 = vld [vmem:[%s202 + $0x240] sm:$0xff]
      %v296 = vld [vmem:[%s202 + $0x248] sm:$0xff]
      %v297 = vld [vmem:[%s202 + $0x250] sm:$0xff]
      %v298 = vld [vmem:[%s202 + $0x258] sm:$0xff]
      %v299 = vld [vmem:[%s202 + $0x260] sm:$0xff]
      %v300 = vld [vmem:[%s202 + $0x268] sm:$0xff]
      %v301 = vld [vmem:[%s202 + $0x270] sm:$0xff]
      %v302 = vld [vmem:[%s202 + $0x278] sm:$0xff]
      %v303 = vld [vmem:[%s202 + $0x280] sm:$0xff]
      %v304 = vld [vmem:[%s202 + $0x288] sm:$0xff]
      %v305 = vld [vmem:[%s202 + $0x290] sm:$0xff]
      %v306 = vld [vmem:[%s202 + $0x298] sm:$0xff]
      %v307 = vld [vmem:[%s202 + $0x2a0] sm:$0xff]
      %v308 = vld [vmem:[%s202 + $0x2a8] sm:$0xff]
      %v309 = vld [vmem:[%s202 + $0x2b0] sm:$0xff]
      %v310 = vld [vmem:[%s202 + $0x2b8] sm:$0xff]
      %v311 = vld [vmem:[%s202 + $0x2c0] sm:$0xff]
      %v312 = vld [vmem:[%s202 + $0x2c8] sm:$0xff]
      %v313 = vld [vmem:[%s202 + $0x2d0] sm:$0xff]
      %v314 = vld [vmem:[%s202 + $0x2d8] sm:$0xff]
      %v315 = vld [vmem:[%s202 + $0x2e0] sm:$0xff]
      %v316 = vld [vmem:[%s202 + $0x2e8] sm:$0xff]
      %v317 = vld [vmem:[%s202 + $0x2f0] sm:$0xff]
      %v318 = vld [vmem:[%s202 + $0x2f8] sm:$0xff]
      %v319 = vld [vmem:[%s202 + $0x300] sm:$0xff]
      %v320 = vld [vmem:[%s202 + $0x308] sm:$0xff]
      %v321 = vld [vmem:[%s202 + $0x310] sm:$0xff]
      %v322 = vld [vmem:[%s202 + $0x318] sm:$0xff]
      %v323 = vld [vmem:[%s202 + $0x320] sm:$0xff]
      %v324 = vld [vmem:[%s202 + $0x328] sm:$0xff]
      %v325 = vld [vmem:[%s202 + $0x330] sm:$0xff]
      %v326 = vld [vmem:[%s202 + $0x338] sm:$0xff]
      %v327 = vld [vmem:[%s202 + $0x340] sm:$0xff]
      %v328 = vld [vmem:[%s202 + $0x348] sm:$0xff]
      %v329 = vld [vmem:[%s202 + $0x350] sm:$0xff]
      %v330 = vld [vmem:[%s202 + $0x358] sm:$0xff]
      %v331 = vld [vmem:[%s202 + $0x360] sm:$0xff]
      %v332 = vld [vmem:[%s202 + $0x368] sm:$0xff]
      %v333 = vld [vmem:[%s202 + $0x370] sm:$0xff]
      %v334 = vld [vmem:[%s202 + $0x378] sm:$0xff]
      %v335 = vld [vmem:[%s202 + $0x380] sm:$0xff]
      %v336 = vld [vmem:[%s202 + $0x388] sm:$0xff]
      %v337 = vld [vmem:[%s202 + $0x390] sm:$0xff]
      %v338 = vld [vmem:[%s202 + $0x398] sm:$0xff]
      %v339 = vld [vmem:[%s202 + $0x3a0] sm:$0xff]
      %v340 = vld [vmem:[%s202 + $0x3a8] sm:$0xff]
      %v341 = vld [vmem:[%s202 + $0x3b0] sm:$0xff]
      %v342 = vld [vmem:[%s202 + $0x3b8] sm:$0xff]
      %v343 = vld [vmem:[%s202 + $0x3c0] sm:$0xff]
      %v344 = vld [vmem:[%s202 + $0x3c8] sm:$0xff]
      %v345 = vld [vmem:[%s202 + $0x3d0] sm:$0xff]
      %v346 = vld [vmem:[%s202 + $0x3d8] sm:$0xff]
      %v347 = vld [vmem:[%s202 + $0x3e0] sm:$0xff]
      %v348 = vld [vmem:[%s202 + $0x3e8] sm:$0xff]
      %v349 = vld [vmem:[%s202 + $0x3f0] sm:$0xff]
      %v350 = vld [vmem:[%s202 + $0x3f8] sm:$0xff]
      %v351 = vld [vmem:[%s202 + $0x400] sm:$0xff]
      %v352 = vld [vmem:[%s202 + $0x408] sm:$0xff]
      %v353 = vld [vmem:[%s202 + $0x410] sm:$0xff]
      %v354 = vld [vmem:[%s202 + $0x418] sm:$0xff]
      %v355 = vld [vmem:[%s202 + $0x420] sm:$0xff]
      %v356 = vld [vmem:[%s202 + $0x428] sm:$0xff]
      %v357 = vld [vmem:[%s202 + $0x430] sm:$0xff]
      %v358 = vld [vmem:[%s202 + $0x438] sm:$0xff]
      %v359 = vld [vmem:[%s202 + $0x440] sm:$0xff]
      %v360 = vld [vmem:[%s202 + $0x448] sm:$0xff]
      %v361 = vld [vmem:[%s202 + $0x450] sm:$0xff]
      %v362 = vld [vmem:[%s202 + $0x458] sm:$0xff]
      %v363 = vld [vmem:[%s202 + $0x460] sm:$0xff]
      %v364 = vld [vmem:[%s202 + $0x468] sm:$0xff]
      %v365 = vld [vmem:[%s202 + $0x470] sm:$0xff]
      %v366 = vld [vmem:[%s202 + $0x478] sm:$0xff]
      %v367 = vld [vmem:[%s202 + $0x480] sm:$0xff]
      %v368 = vld [vmem:[%s202 + $0x488] sm:$0xff]
      %v369 = vld [vmem:[%s202 + $0x490] sm:$0xff]
      %v370 = vld [vmem:[%s202 + $0x498] sm:$0xff]
      %v371 = vld [vmem:[%s202 + $0x4a0] sm:$0xff]
      %v372 = vld [vmem:[%s202 + $0x4a8] sm:$0xff]
      %v373 = vld [vmem:[%s202 + $0x4b0] sm:$0xff]
      %v374 = vld [vmem:[%s202 + $0x4b8] sm:$0xff]
      %v375 = vld [vmem:[%s202 + $0x4c0] sm:$0xff]
      %v376 = vld [vmem:[%s202 + $0x4c8] sm:$0xff]
      %v377 = vld [vmem:[%s202 + $0x4d0] sm:$0xff]
      %v378 = vld [vmem:[%s202 + $0x4d8] sm:$0xff]
      %v379 = vld [vmem:[%s202 + $0x4e0] sm:$0xff]
      %v380 = vld [vmem:[%s202 + $0x4e8] sm:$0xff]
      %v381 = vld [vmem:[%s202 + $0x4f0] sm:$0xff]
      %v382 = vld [vmem:[%s202 + $0x4f8] sm:$0xff]
      %v383 = vld [vmem:[%s202 + $0x500] sm:$0xff]
      %v384 = vld [vmem:[%s202 + $0x508] sm:$0xff]
      %v385 = vld [vmem:[%s202 + $0x510] sm:$0xff]
      %v386 = vld [vmem:[%s202 + $0x518] sm:$0xff]
      %v387 = vld [vmem:[%s202 + $0x520] sm:$0xff]
      %v388 = vld [vmem:[%s202 + $0x528] sm:$0xff]
      %v389 = vld [vmem:[%s202 + $0x530] sm:$0xff]
      %v390 = vld [vmem:[%s202 + $0x538] sm:$0xff]
      %v391 = vld [vmem:[%s202 + $0x540] sm:$0xff]
      %v392 = vld [vmem:[%s202 + $0x548] sm:$0xff]
      %v393 = vld [vmem:[%s202 + $0x550] sm:$0xff]
      %v394 = vld [vmem:[%s202 + $0x558] sm:$0xff]
      %v395 = vld [vmem:[%s202 + $0x560] sm:$0xff]
      %v396 = vld [vmem:[%s202 + $0x568] sm:$0xff]
      %v397 = vld [vmem:[%s202 + $0x570] sm:$0xff]
      %v398 = vld [vmem:[%s202 + $0x578] sm:$0xff]
      %v399 = vld [vmem:[%s202 + $0x580] sm:$0xff]
      %v400 = vld [vmem:[%s202 + $0x588] sm:$0xff]
      %v401 = vld [vmem:[%s202 + $0x590] sm:$0xff]
      %v402 = vld [vmem:[%s202 + $0x598] sm:$0xff]
      %v403 = vld [vmem:[%s202 + $0x5a0] sm:$0xff]
      %v404 = vld [vmem:[%s202 + $0x5a8] sm:$0xff]
      %v405 = vld [vmem:[%s202 + $0x5b0] sm:$0xff]
      %v406 = vld [vmem:[%s202 + $0x5b8] sm:$0xff]
      %v407 = vld [vmem:[%s202 + $0x5c0] sm:$0xff]
      %v408 = vld [vmem:[%s202 + $0x5c8] sm:$0xff]
      %v409 = vld [vmem:[%s202 + $0x5d0] sm:$0xff]
      %v410 = vld [vmem:[%s202 + $0x5d8] sm:$0xff]
      %v411 = vld [vmem:[%s202 + $0x5e0] sm:$0xff]
      %v412 = vld [vmem:[%s202 + $0x5e8] sm:$0xff]
      %v413 = vld [vmem:[%s202 + $0x5f0] sm:$0xff]
      %v414 = vld [vmem:[%s202 + $0x5f8] sm:$0xff]
      %v415 = vld [vmem:[%s202 + $0x600] sm:$0xff]
      %v416 = vld [vmem:[%s202 + $0x608] sm:$0xff]
      %v417 = vld [vmem:[%s202 + $0x610] sm:$0xff]
      %v418 = vld [vmem:[%s202 + $0x618] sm:$0xff]
      %v419 = vld [vmem:[%s202 + $0x620] sm:$0xff]
      %v420 = vld [vmem:[%s202 + $0x628] sm:$0xff]
      %v421 = vld [vmem:[%s202 + $0x630] sm:$0xff]
      %v422 = vld [vmem:[%s202 + $0x638] sm:$0xff]
      %v423 = vld [vmem:[%s202 + $0x640] sm:$0xff]
      %v424 = vld [vmem:[%s202 + $0x648] sm:$0xff]
      %v425 = vld [vmem:[%s202 + $0x650] sm:$0xff]
      %v426 = vld [vmem:[%s202 + $0x658] sm:$0xff]
      %v427 = vld [vmem:[%s202 + $0x660] sm:$0xff]
      %v428 = vld [vmem:[%s202 + $0x668] sm:$0xff]
      %v429 = vld [vmem:[%s202 + $0x670] sm:$0xff]
      %v430 = vld [vmem:[%s202 + $0x678] sm:$0xff]
      %v431 = vld [vmem:[%s202 + $0x680] sm:$0xff]
      %v432 = vld [vmem:[%s202 + $0x688] sm:$0xff]
      %v433 = vadd.f32 %v223, %v224
      %v434 = vadd.f32 %v433, %v225
      %v435 = vadd.f32 %v434, %v226
      %v436 = vadd.f32 %v435, %v227
      %v437 = vadd.f32 %v436, %v228
      %vm438 = vcmask 130048
      %v439 = vsel %vm438, %v229, 0.0
      %v440 = vadd.f32 %v437, %v439
      %441 = vadd.xlane.f32.xlu0 %v440
      %v442 = vpop.xlane.xlu0 %441
      %v443 = vadd.f32 %v230, %v231
      %v444 = vadd.f32 %v443, %v232
      %v445 = vadd.f32 %v444, %v233
      %v446 = vadd.f32 %v445, %v234
      %v447 = vadd.f32 %v446, %v235
      %v448 = vsel %vm438, %v236, 0.0
      %v449 = vadd.f32 %v447, %v448
      %450 = vadd.xlane.f32.xlu0 %v449
      %v451 = vpop.xlane.xlu0 %450
      %v452 = vadd.f32 %v237, %v238
      %v453 = vadd.f32 %v452, %v239
      %v454 = vadd.f32 %v453, %v240
      %v455 = vadd.f32 %v454, %v241
      %v456 = vadd.f32 %v455, %v242
      %v457 = vsel %vm438, %v243, 0.0
      %v458 = vadd.f32 %v456, %v457
      %459 = vadd.xlane.f32.xlu0 %v458
      %v460 = vpop.xlane.xlu0 %459
      %v461 = vadd.f32 %v244, %v245
      %v462 = vadd.f32 %v461, %v246
      %v463 = vadd.f32 %v462, %v247
      %v464 = vadd.f32 %v463, %v248
      %v465 = vadd.f32 %v464, %v249
      %v466 = vsel %vm438, %v250, 0.0
      %v467 = vadd.f32 %v465, %v466
      %468 = vadd.xlane.f32.xlu0 %v467
      %v469 = vpop.xlane.xlu0 %468
      %v470 = vadd.f32 %v251, %v252
      %v471 = vadd.f32 %v470, %v253
      %v472 = vadd.f32 %v471, %v254
      %v473 = vadd.f32 %v472, %v255
      %v474 = vadd.f32 %v473, %v256
      %v475 = vsel %vm438, %v257, 0.0
      %v476 = vadd.f32 %v474, %v475
      %477 = vadd.xlane.f32.xlu0 %v476
      %v478 = vpop.xlane.xlu0 %477
      %v479 = vadd.f32 %v258, %v259
      %v480 = vadd.f32 %v479, %v260
      %v481 = vadd.f32 %v480, %v261
      %v482 = vadd.f32 %v481, %v262
      %v483 = vadd.f32 %v482, %v263
      %v484 = vsel %vm438, %v264, 0.0
      %v485 = vadd.f32 %v483, %v484
      %486 = vadd.xlane.f32.xlu0 %v485
      %v487 = vpop.xlane.xlu0 %486
      %v488 = vadd.f32 %v265, %v266
      %v489 = vadd.f32 %v488, %v267
      %v490 = vadd.f32 %v489, %v268
      %v491 = vadd.f32 %v490, %v269
      %v492 = vadd.f32 %v491, %v270
      %v493 = vsel %vm438, %v271, 0.0
      %v494 = vadd.f32 %v492, %v493
      %495 = vadd.xlane.f32.xlu0 %v494
      %v496 = vpop.xlane.xlu0 %495
      %v497 = vadd.f32 %v272, %v273
      %v498 = vadd.f32 %v497, %v274
      %v499 = vadd.f32 %v498, %v275
      %v500 = vadd.f32 %v499, %v276
      %v501 = vadd.f32 %v500, %v277
      %v502 = vsel %vm438, %v278, 0.0
      %v503 = vadd.f32 %v501, %v502
      %504 = vadd.xlane.f32.xlu0 %v503
      %v505 = vpop.xlane.xlu0 %504
      %v506 = vadd.f32 %v279, %v280
      %v507 = vadd.f32 %v506, %v281
      %v508 = vadd.f32 %v507, %v282
      %v509 = vadd.f32 %v508, %v283
      %v510 = vadd.f32 %v509, %v284
      %v511 = vsel %vm438, %v285, 0.0
      %v512 = vadd.f32 %v510, %v511
      %513 = vadd.xlane.f32.xlu0 %v512
      %v514 = vpop.xlane.xlu0 %513
      %v515 = vadd.f32 %v286, %v287
      %v516 = vadd.f32 %v515, %v288
      %v517 = vadd.f32 %v516, %v289
      %v518 = vadd.f32 %v517, %v290
      %v519 = vadd.f32 %v518, %v291
      %v520 = vsel %vm438, %v292, 0.0
      %v521 = vadd.f32 %v519, %v520
      %522 = vadd.xlane.f32.xlu0 %v521
      %v523 = vpop.xlane.xlu0 %522
      %v524 = vadd.f32 %v293, %v294
      %v525 = vadd.f32 %v524, %v295
      %v526 = vadd.f32 %v525, %v296
      %v527 = vadd.f32 %v526, %v297
      %v528 = vadd.f32 %v527, %v298
      %v529 = vsel %vm438, %v299, 0.0
      %v530 = vadd.f32 %v528, %v529
      %531 = vadd.xlane.f32.xlu0 %v530
      %v532 = vpop.xlane.xlu0 %531
      %v533 = vadd.f32 %v300, %v301
      %v534 = vadd.f32 %v533, %v302
      %v535 = vadd.f32 %v534, %v303
      %v536 = vadd.f32 %v535, %v304
      %v537 = vadd.f32 %v536, %v305
      %v538 = vsel %vm438, %v306, 0.0
      %v539 = vadd.f32 %v537, %v538
      %540 = vadd.xlane.f32.xlu0 %v539
      %v541 = vpop.xlane.xlu0 %540
      %v542 = vadd.f32 %v307, %v308
      %v543 = vadd.f32 %v542, %v309
      %v544 = vadd.f32 %v543, %v310
      %v545 = vadd.f32 %v544, %v311
      %v546 = vadd.f32 %v545, %v312
      %v547 = vsel %vm438, %v313, 0.0
      %v548 = vadd.f32 %v546, %v547
      %549 = vadd.xlane.f32.xlu0 %v548
      %v550 = vpop.xlane.xlu0 %549
      %v551 = vadd.f32 %v314, %v315
      %v552 = vadd.f32 %v551, %v316
      %v553 = vadd.f32 %v552, %v317
      %v554 = vadd.f32 %v553, %v318
      %v555 = vadd.f32 %v554, %v319
      %v556 = vsel %vm438, %v320, 0.0
      %v557 = vadd.f32 %v555, %v556
      %558 = vadd.xlane.f32.xlu0 %v557
      %v559 = vpop.xlane.xlu0 %558
      %v560 = vadd.f32 %v321, %v322
      %v561 = vadd.f32 %v560, %v323
      %v562 = vadd.f32 %v561, %v324
      %v563 = vadd.f32 %v562, %v325
      %v564 = vadd.f32 %v563, %v326
      %v565 = vsel %vm438, %v327, 0.0
      %v566 = vadd.f32 %v564, %v565
      %567 = vadd.xlane.f32.xlu0 %v566
      %v568 = vpop.xlane.xlu0 %567
      %v569 = vadd.f32 %v328, %v329
      %v570 = vadd.f32 %v569, %v330
      %v571 = vadd.f32 %v570, %v331
      %v572 = vadd.f32 %v571, %v332
      %v573 = vadd.f32 %v572, %v333
      %v574 = vsel %vm438, %v334, 0.0
      %v575 = vadd.f32 %v573, %v574
      %576 = vadd.xlane.f32.xlu0 %v575
      %v577 = vpop.xlane.xlu0 %576
      %v578 = vadd.f32 %v335, %v336
      %v579 = vadd.f32 %v578, %v337
      %v580 = vadd.f32 %v579, %v338
      %v581 = vadd.f32 %v580, %v339
      %v582 = vadd.f32 %v581, %v340
      %v583 = vsel %vm438, %v341, 0.0
      %v584 = vadd.f32 %v582, %v583
      %585 = vadd.xlane.f32.xlu0 %v584
      %v586 = vpop.xlane.xlu0 %585
      %v587 = vadd.f32 %v342, %v343
      %v588 = vadd.f32 %v587, %v344
      %v589 = vadd.f32 %v588, %v345
      %v590 = vadd.f32 %v589, %v346
      %v591 = vadd.f32 %v590, %v347
      %v592 = vsel %vm438, %v348, 0.0
      %v593 = vadd.f32 %v591, %v592
      %594 = vadd.xlane.f32.xlu0 %v593
      %v595 = vpop.xlane.xlu0 %594
      %v596 = vadd.f32 %v349, %v350
      %v597 = vadd.f32 %v596, %v351
      %v598 = vadd.f32 %v597, %v352
      %v599 = vadd.f32 %v598, %v353
      %v600 = vadd.f32 %v599, %v354
      %v601 = vsel %vm438, %v355, 0.0
      %v602 = vadd.f32 %v600, %v601
      %603 = vadd.xlane.f32.xlu0 %v602
      %v604 = vpop.xlane.xlu0 %603
      %v605 = vadd.f32 %v356, %v357
      %v606 = vadd.f32 %v605, %v358
      %v607 = vadd.f32 %v606, %v359
      %v608 = vadd.f32 %v607, %v360
      %v609 = vadd.f32 %v608, %v361
      %v610 = vsel %vm438, %v362, 0.0
      %v611 = vadd.f32 %v609, %v610
      %612 = vadd.xlane.f32.xlu0 %v611
      %v613 = vpop.xlane.xlu0 %612
      %v614 = vadd.f32 %v363, %v364
      %v615 = vadd.f32 %v614, %v365
      %v616 = vadd.f32 %v615, %v366
      %v617 = vadd.f32 %v616, %v367
      %v618 = vadd.f32 %v617, %v368
      %v619 = vsel %vm438, %v369, 0.0
      %v620 = vadd.f32 %v618, %v619
      %621 = vadd.xlane.f32.xlu0 %v620
      %v622 = vpop.xlane.xlu0 %621
      %v623 = vadd.f32 %v370, %v371
      %v624 = vadd.f32 %v623, %v372
      %v625 = vadd.f32 %v624, %v373
      %v626 = vadd.f32 %v625, %v374
      %v627 = vadd.f32 %v626, %v375
      %v628 = vsel %vm438, %v376, 0.0
      %v629 = vadd.f32 %v627, %v628
      %630 = vadd.xlane.f32.xlu0 %v629
      %v631 = vpop.xlane.xlu0 %630
      %v632 = vadd.f32 %v377, %v378
      %v633 = vadd.f32 %v632, %v379
      %v634 = vadd.f32 %v633, %v380
      %v635 = vadd.f32 %v634, %v381
      %v636 = vadd.f32 %v635, %v382
      %v637 = vsel %vm438, %v383, 0.0
      %v638 = vadd.f32 %v636, %v637
      %639 = vadd.xlane.f32.xlu0 %v638
      %v640 = vpop.xlane.xlu0 %639
      %v641 = vadd.f32 %v384, %v385
      %v642 = vadd.f32 %v641, %v386
      %v643 = vadd.f32 %v642, %v387
      %v644 = vadd.f32 %v643, %v388
      %v645 = vadd.f32 %v644, %v389
      %v646 = vsel %vm438, %v390, 0.0
      %v647 = vadd.f32 %v645, %v646
      %648 = vadd.xlane.f32.xlu0 %v647
      %v649 = vpop.xlane.xlu0 %648
      %v650 = vadd.f32 %v391, %v392
      %v651 = vadd.f32 %v650, %v393
      %v652 = vadd.f32 %v651, %v394
      %v653 = vadd.f32 %v652, %v395
      %v654 = vadd.f32 %v653, %v396
      %v655 = vsel %vm438, %v397, 0.0
      %v656 = vadd.f32 %v654, %v655
      %657 = vadd.xlane.f32.xlu0 %v656
      %v658 = vpop.xlane.xlu0 %657
      %v659 = vadd.f32 %v398, %v399
      %v660 = vadd.f32 %v659, %v400
      %v661 = vadd.f32 %v660, %v401
      %v662 = vadd.f32 %v661, %v402
      %v663 = vadd.f32 %v662, %v403
      %v664 = vsel %vm438, %v404, 0.0
      %v665 = vadd.f32 %v663, %v664
      %666 = vadd.xlane.f32.xlu0 %v665
      %v667 = vpop.xlane.xlu0 %666
      %v668 = vadd.f32 %v405, %v406
      %v669 = vadd.f32 %v668, %v407
      %v670 = vadd.f32 %v669, %v408
      %v671 = vadd.f32 %v670, %v409
      %v672 = vadd.f32 %v671, %v410
      %v673 = vsel %vm438, %v411, 0.0
      %v674 = vadd.f32 %v672, %v673
      %675 = vadd.xlane.f32.xlu0 %v674
      %v676 = vpop.xlane.xlu0 %675
      %v677 = vadd.f32 %v412, %v413
      %v678 = vadd.f32 %v677, %v414
      %v679 = vadd.f32 %v678, %v415
      %v680 = vadd.f32 %v679, %v416
      %v681 = vadd.f32 %v680, %v417
      %v682 = vsel %vm438, %v418, 0.0
      %v683 = vadd.f32 %v681, %v682
      %684 = vadd.xlane.f32.xlu0 %v683
      %v685 = vpop.xlane.xlu0 %684
      %v686 = vadd.f32 %v419, %v420
      %v687 = vadd.f32 %v686, %v421
      %v688 = vadd.f32 %v687, %v422
      %v689 = vadd.f32 %v688, %v423
      %v690 = vadd.f32 %v689, %v424
      %v691 = vsel %vm438, %v425, 0.0
      %v692 = vadd.f32 %v690, %v691
      %693 = vadd.xlane.f32.xlu0 %v692
      %v694 = vpop.xlane.xlu0 %693
      %v695 = vadd.f32 %v426, %v427
      %v696 = vadd.f32 %v695, %v428
      %v697 = vadd.f32 %v696, %v429
      %v698 = vadd.f32 %v697, %v430
      %v699 = vadd.f32 %v698, %v431
      %v700 = vsel %vm438, %v432, 0.0
      %v701 = vadd.f32 %v699, %v700
      %702 = vadd.xlane.f32.xlu0 %v701
      %v703 = vpop.xlane.xlu0 %702
      %v704 = vmul.f32 %v223, %v223
      %v705 = vmul.f32 %v224, %v224
      %v706 = vmul.f32 %v225, %v225
      %v707 = vmul.f32 %v226, %v226
      %v708 = vmul.f32 %v227, %v227
      %v709 = vmul.f32 %v228, %v228
      %v710 = vmul.f32 %v229, %v229
      %v711 = vmul.f32 %v230, %v230
      %v712 = vmul.f32 %v231, %v231
      %v713 = vmul.f32 %v232, %v232
      %v714 = vmul.f32 %v233, %v233
      %v715 = vmul.f32 %v234, %v234
      %v716 = vmul.f32 %v235, %v235
      %v717 = vmul.f32 %v236, %v236
      %v718 = vmul.f32 %v237, %v237
      %v719 = vmul.f32 %v238, %v238
      %v720 = vmul.f32 %v239, %v239
      %v721 = vmul.f32 %v240, %v240
      %v722 = vmul.f32 %v241, %v241
      %v723 = vmul.f32 %v242, %v242
      %v724 = vmul.f32 %v243, %v243
      %v725 = vmul.f32 %v244, %v244
      %v726 = vmul.f32 %v245, %v245
      %v727 = vmul.f32 %v246, %v246
      %v728 = vmul.f32 %v247, %v247
      %v729 = vmul.f32 %v248, %v248
      %v730 = vmul.f32 %v249, %v249
      %v731 = vmul.f32 %v250, %v250
      %v732 = vmul.f32 %v251, %v251
      %v733 = vmul.f32 %v252, %v252
      %v734 = vmul.f32 %v253, %v253
      %v735 = vmul.f32 %v254, %v254
      %v736 = vmul.f32 %v255, %v255
      %v737 = vmul.f32 %v256, %v256
      %v738 = vmul.f32 %v257, %v257
      %v739 = vmul.f32 %v258, %v258
      %v740 = vmul.f32 %v259, %v259
      %v741 = vmul.f32 %v260, %v260
      %v742 = vmul.f32 %v261, %v261
      %v743 = vmul.f32 %v262, %v262
      %v744 = vmul.f32 %v263, %v263
      %v745 = vmul.f32 %v264, %v264
      %v746 = vmul.f32 %v265, %v265
      %v747 = vmul.f32 %v266, %v266
      %v748 = vmul.f32 %v267, %v267
      %v749 = vmul.f32 %v268, %v268
      %v750 = vmul.f32 %v269, %v269
      %v751 = vmul.f32 %v270, %v270
      %v752 = vmul.f32 %v271, %v271
      %v753 = vmul.f32 %v272, %v272
      %v754 = vmul.f32 %v273, %v273
      %v755 = vmul.f32 %v274, %v274
      %v756 = vmul.f32 %v275, %v275
      %v757 = vmul.f32 %v276, %v276
      %v758 = vmul.f32 %v277, %v277
      %v759 = vmul.f32 %v278, %v278
      %v760 = vmul.f32 %v279, %v279
      %v761 = vmul.f32 %v280, %v280
      %v762 = vmul.f32 %v281, %v281
      %v763 = vmul.f32 %v282, %v282
      %v764 = vmul.f32 %v283, %v283
      %v765 = vmul.f32 %v284, %v284
      %v766 = vmul.f32 %v285, %v285
      %v767 = vmul.f32 %v286, %v286
      %v768 = vmul.f32 %v287, %v287
      %v769 = vmul.f32 %v288, %v288
      %v770 = vmul.f32 %v289, %v289
      %v771 = vmul.f32 %v290, %v290
      %v772 = vmul.f32 %v291, %v291
      %v773 = vmul.f32 %v292, %v292
      %v774 = vmul.f32 %v293, %v293
      %v775 = vmul.f32 %v294, %v294
      %v776 = vmul.f32 %v295, %v295
      %v777 = vmul.f32 %v296, %v296
      %v778 = vmul.f32 %v297, %v297
      %v779 = vmul.f32 %v298, %v298
      %v780 = vmul.f32 %v299, %v299
      %v781 = vmul.f32 %v300, %v300
      %v782 = vmul.f32 %v301, %v301
      %v783 = vmul.f32 %v302, %v302
      %v784 = vmul.f32 %v303, %v303
      %v785 = vmul.f32 %v304, %v304
      %v786 = vmul.f32 %v305, %v305
      %v787 = vmul.f32 %v306, %v306
      %v788 = vmul.f32 %v307, %v307
      %v789 = vmul.f32 %v308, %v308
      %v790 = vmul.f32 %v309, %v309
      %v791 = vmul.f32 %v310, %v310
      %v792 = vmul.f32 %v311, %v311
      %v793 = vmul.f32 %v312, %v312
      %v794 = vmul.f32 %v313, %v313
      %v795 = vmul.f32 %v314, %v314
      %v796 = vmul.f32 %v315, %v315
      %v797 = vmul.f32 %v316, %v316
      %v798 = vmul.f32 %v317, %v317
      %v799 = vmul.f32 %v318, %v318
      %v800 = vmul.f32 %v319, %v319
      %v801 = vmul.f32 %v320, %v320
      %v802 = vmul.f32 %v321, %v321
      %v803 = vmul.f32 %v322, %v322
      %v804 = vmul.f32 %v323, %v323
      %v805 = vmul.f32 %v324, %v324
      %v806 = vmul.f32 %v325, %v325
      %v807 = vmul.f32 %v326, %v326
      %v808 = vmul.f32 %v327, %v327
      %v809 = vmul.f32 %v328, %v328
      %v810 = vmul.f32 %v329, %v329
      %v811 = vmul.f32 %v330, %v330
      %v812 = vmul.f32 %v331, %v331
      %v813 = vmul.f32 %v332, %v332
      %v814 = vmul.f32 %v333, %v333
      %v815 = vmul.f32 %v334, %v334
      %v816 = vmul.f32 %v335, %v335
      %v817 = vmul.f32 %v336, %v336
      %v818 = vmul.f32 %v337, %v337
      %v819 = vmul.f32 %v338, %v338
      %v820 = vmul.f32 %v339, %v339
      %v821 = vmul.f32 %v340, %v340
      %v822 = vmul.f32 %v341, %v341
      %v823 = vmul.f32 %v342, %v342
      %v824 = vmul.f32 %v343, %v343
      %v825 = vmul.f32 %v344, %v344
      %v826 = vmul.f32 %v345, %v345
      %v827 = vmul.f32 %v346, %v346
      %v828 = vmul.f32 %v347, %v347
      %v829 = vmul.f32 %v348, %v348
      %v830 = vmul.f32 %v349, %v349
      %v831 = vmul.f32 %v350, %v350
      %v832 = vmul.f32 %v351, %v351
      %v833 = vmul.f32 %v352, %v352
      %v834 = vmul.f32 %v353, %v353
      %v835 = vmul.f32 %v354, %v354
      %v836 = vmul.f32 %v355, %v355
      %v837 = vmul.f32 %v356, %v356
      %v838 = vmul.f32 %v357, %v357
      %v839 = vmul.f32 %v358, %v358
      %v840 = vmul.f32 %v359, %v359
      %v841 = vmul.f32 %v360, %v360
      %v842 = vmul.f32 %v361, %v361
      %v843 = vmul.f32 %v362, %v362
      %v844 = vmul.f32 %v363, %v363
      %v845 = vmul.f32 %v364, %v364
      %v846 = vmul.f32 %v365, %v365
      %v847 = vmul.f32 %v366, %v366
      %v848 = vmul.f32 %v367, %v367
      %v849 = vmul.f32 %v368, %v368
      %v850 = vmul.f32 %v369, %v369
      %v851 = vmul.f32 %v370, %v370
      %v852 = vmul.f32 %v371, %v371
      %v853 = vmul.f32 %v372, %v372
      %v854 = vmul.f32 %v373, %v373
      %v855 = vmul.f32 %v374, %v374
      %v856 = vmul.f32 %v375, %v375
      %v857 = vmul.f32 %v376, %v376
      %v858 = vmul.f32 %v377, %v377
      %v859 = vmul.f32 %v378, %v378
      %v860 = vmul.f32 %v379, %v379
      %v861 = vmul.f32 %v380, %v380
      %v862 = vmul.f32 %v381, %v381
      %v863 = vmul.f32 %v382, %v382
      %v864 = vmul.f32 %v383, %v383
      %v865 = vmul.f32 %v384, %v384
      %v866 = vmul.f32 %v385, %v385
      %v867 = vmul.f32 %v386, %v386
      %v868 = vmul.f32 %v387, %v387
      %v869 = vmul.f32 %v388, %v388
      %v870 = vmul.f32 %v389, %v389
      %v871 = vmul.f32 %v390, %v390
      %v872 = vmul.f32 %v391, %v391
      %v873 = vmul.f32 %v392, %v392
      %v874 = vmul.f32 %v393, %v393
      %v875 = vmul.f32 %v394, %v394
      %v876 = vmul.f32 %v395, %v395
      %v877 = vmul.f32 %v396, %v396
      %v878 = vmul.f32 %v397, %v397
      %v879 = vmul.f32 %v398, %v398
      %v880 = vmul.f32 %v399, %v399
      %v881 = vmul.f32 %v400, %v400
      %v882 = vmul.f32 %v401, %v401
      %v883 = vmul.f32 %v402, %v402
      %v884 = vmul.f32 %v403, %v403
      %v885 = vmul.f32 %v404, %v404
      %v886 = vmul.f32 %v405, %v405
      %v887 = vmul.f32 %v406, %v406
      %v888 = vmul.f32 %v407, %v407
      %v889 = vmul.f32 %v408, %v408
      %v890 = vmul.f32 %v409, %v409
      %v891 = vmul.f32 %v410, %v410
      %v892 = vmul.f32 %v411, %v411
      %v893 = vmul.f32 %v412, %v412
      %v894 = vmul.f32 %v413, %v413
      %v895 = vmul.f32 %v414, %v414
      %v896 = vmul.f32 %v415, %v415
      %v897 = vmul.f32 %v416, %v416
      %v898 = vmul.f32 %v417, %v417
      %v899 = vmul.f32 %v418, %v418
      %v900 = vmul.f32 %v419, %v419
      %v901 = vmul.f32 %v420, %v420
      %v902 = vmul.f32 %v421, %v421
      %v903 = vmul.f32 %v422, %v422
      %v904 = vmul.f32 %v423, %v423
      %v905 = vmul.f32 %v424, %v424
      %v906 = vmul.f32 %v425, %v425
      %v907 = vmul.f32 %v426, %v426
      %v908 = vmul.f32 %v427, %v427
      %v909 = vmul.f32 %v428, %v428
      %v910 = vmul.f32 %v429, %v429
      %v911 = vmul.f32 %v430, %v430
      %v912 = vmul.f32 %v431, %v431
      %v913 = vmul.f32 %v432, %v432
      %v914 = vadd.f32 %v704, %v705
      %v915 = vadd.f32 %v914, %v706
      %v916 = vadd.f32 %v915, %v707
      %v917 = vadd.f32 %v916, %v708
      %v918 = vadd.f32 %v917, %v709
      %v919 = vsel %vm438, %v710, 0.0
      %v920 = vadd.f32 %v918, %v919
      %921 = vadd.xlane.f32.xlu0 %v920
      %v922 = vpop.xlane.xlu0 %921
      %v923 = vadd.f32 %v711, %v712
      %v924 = vadd.f32 %v923, %v713
      %v925 = vadd.f32 %v924, %v714
      %v926 = vadd.f32 %v925, %v715
      %v927 = vadd.f32 %v926, %v716
      %v928 = vsel %vm438, %v717, 0.0
      %v929 = vadd.f32 %v927, %v928
      %930 = vadd.xlane.f32.xlu0 %v929
      %v931 = vpop.xlane.xlu0 %930
      %v932 = vadd.f32 %v718, %v719
      %v933 = vadd.f32 %v932, %v720
      %v934 = vadd.f32 %v933, %v721
      %v935 = vadd.f32 %v934, %v722
      %v936 = vadd.f32 %v935, %v723
      %v937 = vsel %vm438, %v724, 0.0
      %v938 = vadd.f32 %v936, %v937
      %939 = vadd.xlane.f32.xlu0 %v938
      %v940 = vpop.xlane.xlu0 %939
      %v941 = vadd.f32 %v725, %v726
      %v942 = vadd.f32 %v941, %v727
      %v943 = vadd.f32 %v942, %v728
      %v944 = vadd.f32 %v943, %v729
      %v945 = vadd.f32 %v944, %v730
      %v946 = vsel %vm438, %v731, 0.0
      %v947 = vadd.f32 %v945, %v946
      %948 = vadd.xlane.f32.xlu0 %v947
      %v949 = vpop.xlane.xlu0 %948
      %v950 = vadd.f32 %v732, %v733
      %v951 = vadd.f32 %v950, %v734
      %v952 = vadd.f32 %v951, %v735
      %v953 = vadd.f32 %v952, %v736
      %v954 = vadd.f32 %v953, %v737
      %v955 = vsel %vm438, %v738, 0.0
      %v956 = vadd.f32 %v954, %v955
      %957 = vadd.xlane.f32.xlu0 %v956
      %v958 = vpop.xlane.xlu0 %957
      %v959 = vadd.f32 %v739, %v740
      %v960 = vadd.f32 %v959, %v741
      %v961 = vadd.f32 %v960, %v742
      %v962 = vadd.f32 %v961, %v743
      %v963 = vadd.f32 %v962, %v744
      %v964 = vsel %vm438, %v745, 0.0
      %v965 = vadd.f32 %v963, %v964
      %966 = vadd.xlane.f32.xlu0 %v965
      %v967 = vpop.xlane.xlu0 %966
      %v968 = vadd.f32 %v746, %v747
      %v969 = vadd.f32 %v968, %v748
      %v970 = vadd.f32 %v969, %v749
      %v971 = vadd.f32 %v970, %v750
      %v972 = vadd.f32 %v971, %v751
      %v973 = vsel %vm438, %v752, 0.0
      %v974 = vadd.f32 %v972, %v973
      %975 = vadd.xlane.f32.xlu0 %v974
      %v976 = vpop.xlane.xlu0 %975
      %v977 = vadd.f32 %v753, %v754
      %v978 = vadd.f32 %v977, %v755
      %v979 = vadd.f32 %v978, %v756
      %v980 = vadd.f32 %v979, %v757
      %v981 = vadd.f32 %v980, %v758
      %v982 = vsel %vm438, %v759, 0.0
      %v983 = vadd.f32 %v981, %v982
      %984 = vadd.xlane.f32.xlu0 %v983
      %v985 = vpop.xlane.xlu0 %984
      %v986 = vadd.f32 %v760, %v761
      %v987 = vadd.f32 %v986, %v762
      %v988 = vadd.f32 %v987, %v763
      %v989 = vadd.f32 %v988, %v764
      %v990 = vadd.f32 %v989, %v765
      %v991 = vsel %vm438, %v766, 0.0
      %v992 = vadd.f32 %v990, %v991
      %993 = vadd.xlane.f32.xlu0 %v992
      %v994 = vpop.xlane.xlu0 %993
      %v995 = vadd.f32 %v767, %v768
      %v996 = vadd.f32 %v995, %v769
      %v997 = vadd.f32 %v996, %v770
      %v998 = vadd.f32 %v997, %v771
      %v999 = vadd.f32 %v998, %v772
      %v1000 = vsel %vm438, %v773, 0.0
      %v1001 = vadd.f32 %v999, %v1000
      %1002 = vadd.xlane.f32.xlu0 %v1001
      %v1003 = vpop.xlane.xlu0 %1002
      %v1004 = vadd.f32 %v774, %v775
      %v1005 = vadd.f32 %v1004, %v776
      %v1006 = vadd.f32 %v1005, %v777
      %v1007 = vadd.f32 %v1006, %v778
      %v1008 = vadd.f32 %v1007, %v779
      %v1009 = vsel %vm438, %v780, 0.0
      %v1010 = vadd.f32 %v1008, %v1009
      %1011 = vadd.xlane.f32.xlu0 %v1010
      %v1012 = vpop.xlane.xlu0 %1011
      %v1013 = vadd.f32 %v781, %v782
      %v1014 = vadd.f32 %v1013, %v783
      %v1015 = vadd.f32 %v1014, %v784
      %v1016 = vadd.f32 %v1015, %v785
      %v1017 = vadd.f32 %v1016, %v786
      %v1018 = vsel %vm438, %v787, 0.0
      %v1019 = vadd.f32 %v1017, %v1018
      %1020 = vadd.xlane.f32.xlu0 %v1019
      %v1021 = vpop.xlane.xlu0 %1020
      %v1022 = vadd.f32 %v788, %v789
      %v1023 = vadd.f32 %v1022, %v790
      %v1024 = vadd.f32 %v1023, %v791
      %v1025 = vadd.f32 %v1024, %v792
      %v1026 = vadd.f32 %v1025, %v793
      %v1027 = vsel %vm438, %v794, 0.0
      %v1028 = vadd.f32 %v1026, %v1027
      %1029 = vadd.xlane.f32.xlu0 %v1028
      %v1030 = vpop.xlane.xlu0 %1029
      %v1031 = vadd.f32 %v795, %v796
      %v1032 = vadd.f32 %v1031, %v797
      %v1033 = vadd.f32 %v1032, %v798
      %v1034 = vadd.f32 %v1033, %v799
      %v1035 = vadd.f32 %v1034, %v800
      %v1036 = vsel %vm438, %v801, 0.0
      %v1037 = vadd.f32 %v1035, %v1036
      %1038 = vadd.xlane.f32.xlu0 %v1037
      %v1039 = vpop.xlane.xlu0 %1038
      %v1040 = vadd.f32 %v802, %v803
      %v1041 = vadd.f32 %v1040, %v804
      %v1042 = vadd.f32 %v1041, %v805
      %v1043 = vadd.f32 %v1042, %v806
      %v1044 = vadd.f32 %v1043, %v807
      %v1045 = vsel %vm438, %v808, 0.0
      %v1046 = vadd.f32 %v1044, %v1045
      %1047 = vadd.xlane.f32.xlu0 %v1046
      %v1048 = vpop.xlane.xlu0 %1047
      %v1049 = vadd.f32 %v809, %v810
      %v1050 = vadd.f32 %v1049, %v811
      %v1051 = vadd.f32 %v1050, %v812
      %v1052 = vadd.f32 %v1051, %v813
      %v1053 = vadd.f32 %v1052, %v814
      %v1054 = vsel %vm438, %v815, 0.0
      %v1055 = vadd.f32 %v1053, %v1054
      %1056 = vadd.xlane.f32.xlu0 %v1055
      %v1057 = vpop.xlane.xlu0 %1056
      %v1058 = vadd.f32 %v816, %v817
      %v1059 = vadd.f32 %v1058, %v818
      %v1060 = vadd.f32 %v1059, %v819
      %v1061 = vadd.f32 %v1060, %v820
      %v1062 = vadd.f32 %v1061, %v821
      %v1063 = vsel %vm438, %v822, 0.0
      %v1064 = vadd.f32 %v1062, %v1063
      %1065 = vadd.xlane.f32.xlu0 %v1064
      %v1066 = vpop.xlane.xlu0 %1065
      %v1067 = vadd.f32 %v823, %v824
      %v1068 = vadd.f32 %v1067, %v825
      %v1069 = vadd.f32 %v1068, %v826
      %v1070 = vadd.f32 %v1069, %v827
      %v1071 = vadd.f32 %v1070, %v828
      %v1072 = vsel %vm438, %v829, 0.0
      %v1073 = vadd.f32 %v1071, %v1072
      %1074 = vadd.xlane.f32.xlu0 %v1073
      %v1075 = vpop.xlane.xlu0 %1074
      %v1076 = vadd.f32 %v830, %v831
      %v1077 = vadd.f32 %v1076, %v832
      %v1078 = vadd.f32 %v1077, %v833
      %v1079 = vadd.f32 %v1078, %v834
      %v1080 = vadd.f32 %v1079, %v835
      %v1081 = vsel %vm438, %v836, 0.0
      %v1082 = vadd.f32 %v1080, %v1081
      %1083 = vadd.xlane.f32.xlu0 %v1082
      %v1084 = vpop.xlane.xlu0 %1083
      %v1085 = vadd.f32 %v837, %v838
      %v1086 = vadd.f32 %v1085, %v839
      %v1087 = vadd.f32 %v1086, %v840
      %v1088 = vadd.f32 %v1087, %v841
      %v1089 = vadd.f32 %v1088, %v842
      %v1090 = vsel %vm438, %v843, 0.0
      %v1091 = vadd.f32 %v1089, %v1090
      %1092 = vadd.xlane.f32.xlu0 %v1091
      %v1093 = vpop.xlane.xlu0 %1092
      %v1094 = vadd.f32 %v844, %v845
      %v1095 = vadd.f32 %v1094, %v846
      %v1096 = vadd.f32 %v1095, %v847
      %v1097 = vadd.f32 %v1096, %v848
      %v1098 = vadd.f32 %v1097, %v849
      %v1099 = vsel %vm438, %v850, 0.0
      %v1100 = vadd.f32 %v1098, %v1099
      %1101 = vadd.xlane.f32.xlu0 %v1100
      %v1102 = vpop.xlane.xlu0 %1101
      %v1103 = vadd.f32 %v851, %v852
      %v1104 = vadd.f32 %v1103, %v853
      %v1105 = vadd.f32 %v1104, %v854
      %v1106 = vadd.f32 %v1105, %v855
      %v1107 = vadd.f32 %v1106, %v856
      %v1108 = vsel %vm438, %v857, 0.0
      %v1109 = vadd.f32 %v1107, %v1108
      %1110 = vadd.xlane.f32.xlu0 %v1109
      %v1111 = vpop.xlane.xlu0 %1110
      %v1112 = vadd.f32 %v858, %v859
      %v1113 = vadd.f32 %v1112, %v860
      %v1114 = vadd.f32 %v1113, %v861
      %v1115 = vadd.f32 %v1114, %v862
      %v1116 = vadd.f32 %v1115, %v863
      %v1117 = vsel %vm438, %v864, 0.0
      %v1118 = vadd.f32 %v1116, %v1117
      %1119 = vadd.xlane.f32.xlu0 %v1118
      %v1120 = vpop.xlane.xlu0 %1119
      %v1121 = vadd.f32 %v865, %v866
      %v1122 = vadd.f32 %v1121, %v867
      %v1123 = vadd.f32 %v1122, %v868
      %v1124 = vadd.f32 %v1123, %v869
      %v1125 = vadd.f32 %v1124, %v870
      %v1126 = vsel %vm438, %v871, 0.0
      %v1127 = vadd.f32 %v1125, %v1126
      %1128 = vadd.xlane.f32.xlu0 %v1127
      %v1129 = vpop.xlane.xlu0 %1128
      %v1130 = vadd.f32 %v872, %v873
      %v1131 = vadd.f32 %v1130, %v874
      %v1132 = vadd.f32 %v1131, %v875
      %v1133 = vadd.f32 %v1132, %v876
      %v1134 = vadd.f32 %v1133, %v877
      %v1135 = vsel %vm438, %v878, 0.0
      %v1136 = vadd.f32 %v1134, %v1135
      %1137 = vadd.xlane.f32.xlu0 %v1136
      %v1138 = vpop.xlane.xlu0 %1137
      %v1139 = vadd.f32 %v879, %v880
      %v1140 = vadd.f32 %v1139, %v881
      %v1141 = vadd.f32 %v1140, %v882
      %v1142 = vadd.f32 %v1141, %v883
      %v1143 = vadd.f32 %v1142, %v884
      %v1144 = vsel %vm438, %v885, 0.0
      %v1145 = vadd.f32 %v1143, %v1144
      %1146 = vadd.xlane.f32.xlu0 %v1145
      %v1147 = vpop.xlane.xlu0 %1146
      %v1148 = vadd.f32 %v886, %v887
      %v1149 = vadd.f32 %v1148, %v888
      %v1150 = vadd.f32 %v1149, %v889
      %v1151 = vadd.f32 %v1150, %v890
      %v1152 = vadd.f32 %v1151, %v891
      %v1153 = vsel %vm438, %v892, 0.0
      %v1154 = vadd.f32 %v1152, %v1153
      %1155 = vadd.xlane.f32.xlu0 %v1154
      %v1156 = vpop.xlane.xlu0 %1155
      %v1157 = vadd.f32 %v893, %v894
      %v1158 = vadd.f32 %v1157, %v895
      %v1159 = vadd.f32 %v1158, %v896
      %v1160 = vadd.f32 %v1159, %v897
      %v1161 = vadd.f32 %v1160, %v898
      %v1162 = vsel %vm438, %v899, 0.0
      %v1163 = vadd.f32 %v1161, %v1162
      %1164 = vadd.xlane.f32.xlu0 %v1163
      %v1165 = vpop.xlane.xlu0 %1164
      %v1166 = vadd.f32 %v900, %v901
      %v1167 = vadd.f32 %v1166, %v902
      %v1168 = vadd.f32 %v1167, %v903
      %v1169 = vadd.f32 %v1168, %v904
      %v1170 = vadd.f32 %v1169, %v905
      %v1171 = vsel %vm438, %v906, 0.0
      %v1172 = vadd.f32 %v1170, %v1171
      %1173 = vadd.xlane.f32.xlu0 %v1172
      %v1174 = vpop.xlane.xlu0 %1173
      %v1175 = vadd.f32 %v907, %v908
      %v1176 = vadd.f32 %v1175, %v909
      %v1177 = vadd.f32 %v1176, %v910
      %v1178 = vadd.f32 %v1177, %v911
      %v1179 = vadd.f32 %v1178, %v912
      %v1180 = vsel %vm438, %v913, 0.0
      %v1181 = vadd.f32 %v1179, %v1180
      %1182 = vadd.xlane.f32.xlu0 %v1181
      %v1183 = vpop.xlane.xlu0 %1182
      %v1184 = vmul.f32 %v442, 0.0012755102
      %v1185 = vmul.f32 %v451, 0.0012755102
      %v1186 = vmul.f32 %v460, 0.0012755102
      %v1187 = vmul.f32 %v469, 0.0012755102
      %v1188 = vmul.f32 %v478, 0.0012755102
      %v1189 = vmul.f32 %v487, 0.0012755102
      %v1190 = vmul.f32 %v496, 0.0012755102
      %v1191 = vmul.f32 %v505, 0.0012755102
      %v1192 = vmul.f32 %v514, 0.0012755102
      %v1193 = vmul.f32 %v523, 0.0012755102
      %v1194 = vmul.f32 %v532, 0.0012755102
      %v1195 = vmul.f32 %v541, 0.0012755102
      %v1196 = vmul.f32 %v550, 0.0012755102
      %v1197 = vmul.f32 %v559, 0.0012755102
      %v1198 = vmul.f32 %v568, 0.0012755102
      %v1199 = vmul.f32 %v577, 0.0012755102
      %v1200 = vmul.f32 %v586, 0.0012755102
      %v1201 = vmul.f32 %v595, 0.0012755102
      %v1202 = vmul.f32 %v604, 0.0012755102
      %v1203 = vmul.f32 %v613, 0.0012755102
      %v1204 = vmul.f32 %v622, 0.0012755102
      %v1205 = vmul.f32 %v631, 0.0012755102
      %v1206 = vmul.f32 %v640, 0.0012755102
      %v1207 = vmul.f32 %v649, 0.0012755102
      %v1208 = vmul.f32 %v658, 0.0012755102
      %v1209 = vmul.f32 %v667, 0.0012755102
      %v1210 = vmul.f32 %v676, 0.0012755102
      %v1211 = vmul.f32 %v685, 0.0012755102
      %v1212 = vmul.f32 %v694, 0.0012755102
      %v1213 = vmul.f32 %v703, 0.0012755102
      %v1214 = vmul.f32 %v922, 0.0012755102
      %v1215 = vmul.f32 %v931, 0.0012755102
      %v1216 = vmul.f32 %v940, 0.0012755102
      %v1217 = vmul.f32 %v949, 0.0012755102
      %v1218 = vmul.f32 %v958, 0.0012755102
      %v1219 = vmul.f32 %v967, 0.0012755102
      %v1220 = vmul.f32 %v976, 0.0012755102
      %v1221 = vmul.f32 %v985, 0.0012755102
      %v1222 = vmul.f32 %v994, 0.0012755102
      %v1223 = vmul.f32 %v1003, 0.0012755102
      %v1224 = vmul.f32 %v1012, 0.0012755102
      %v1225 = vmul.f32 %v1021, 0.0012755102
      %v1226 = vmul.f32 %v1030, 0.0012755102
      %v1227 = vmul.f32 %v1039, 0.0012755102
      %v1228 = vmul.f32 %v1048, 0.0012755102
      %v1229 = vmul.f32 %v1057, 0.0012755102
      %v1230 = vmul.f32 %v1066, 0.0012755102
      %v1231 = vmul.f32 %v1075, 0.0012755102
      %v1232 = vmul.f32 %v1084, 0.0012755102
      %v1233 = vmul.f32 %v1093, 0.0012755102
      %v1234 = vmul.f32 %v1102, 0.0012755102
      %v1235 = vmul.f32 %v1111, 0.0012755102
      %v1236 = vmul.f32 %v1120, 0.0012755102
      %v1237 = vmul.f32 %v1129, 0.0012755102
      %v1238 = vmul.f32 %v1138, 0.0012755102
      %v1239 = vmul.f32 %v1147, 0.0012755102
      %v1240 = vmul.f32 %v1156, 0.0012755102
      %v1241 = vmul.f32 %v1165, 0.0012755102
      %v1242 = vmul.f32 %v1174, 0.0012755102
      %v1243 = vmul.f32 %v1183, 0.0012755102
      %v1244 = vmul.f32 %v1184, %v1184
      %v1245 = vmul.f32 %v1185, %v1185
      %v1246 = vmul.f32 %v1186, %v1186
      %v1247 = vmul.f32 %v1187, %v1187
      %v1248 = vmul.f32 %v1188, %v1188
      %v1249 = vmul.f32 %v1189, %v1189
      %v1250 = vmul.f32 %v1190, %v1190
      %v1251 = vmul.f32 %v1191, %v1191
      %v1252 = vmul.f32 %v1192, %v1192
      %v1253 = vmul.f32 %v1193, %v1193
      %v1254 = vmul.f32 %v1194, %v1194
      %v1255 = vmul.f32 %v1195, %v1195
      %v1256 = vmul.f32 %v1196, %v1196
      %v1257 = vmul.f32 %v1197, %v1197
      %v1258 = vmul.f32 %v1198, %v1198
      %v1259 = vmul.f32 %v1199, %v1199
      %v1260 = vmul.f32 %v1200, %v1200
      %v1261 = vmul.f32 %v1201, %v1201
      %v1262 = vmul.f32 %v1202, %v1202
      %v1263 = vmul.f32 %v1203, %v1203
      %v1264 = vmul.f32 %v1204, %v1204
      %v1265 = vmul.f32 %v1205, %v1205
      %v1266 = vmul.f32 %v1206, %v1206
      %v1267 = vmul.f32 %v1207, %v1207
      %v1268 = vmul.f32 %v1208, %v1208
      %v1269 = vmul.f32 %v1209, %v1209
      %v1270 = vmul.f32 %v1210, %v1210
      %v1271 = vmul.f32 %v1211, %v1211
      %v1272 = vmul.f32 %v1212, %v1212
      %v1273 = vmul.f32 %v1213, %v1213
      %v1274 = vsub.f32 %v1214, %v1244
      %v1275 = vsub.f32 %v1215, %v1245
      %v1276 = vsub.f32 %v1216, %v1246
      %v1277 = vsub.f32 %v1217, %v1247
      %v1278 = vsub.f32 %v1218, %v1248
      %v1279 = vsub.f32 %v1219, %v1249
      %v1280 = vsub.f32 %v1220, %v1250
      %v1281 = vsub.f32 %v1221, %v1251
      %v1282 = vsub.f32 %v1222, %v1252
      %v1283 = vsub.f32 %v1223, %v1253
      %v1284 = vsub.f32 %v1224, %v1254
      %v1285 = vsub.f32 %v1225, %v1255
      %v1286 = vsub.f32 %v1226, %v1256
      %v1287 = vsub.f32 %v1227, %v1257
      %v1288 = vsub.f32 %v1228, %v1258
      %v1289 = vsub.f32 %v1229, %v1259
      %v1290 = vsub.f32 %v1230, %v1260
      %v1291 = vsub.f32 %v1231, %v1261
      %v1292 = vsub.f32 %v1232, %v1262
      %v1293 = vsub.f32 %v1233, %v1263
      %v1294 = vsub.f32 %v1234, %v1264
      %v1295 = vsub.f32 %v1235, %v1265
      %v1296 = vsub.f32 %v1236, %v1266
      %v1297 = vsub.f32 %v1237, %v1267
      %v1298 = vsub.f32 %v1238, %v1268
      %v1299 = vsub.f32 %v1239, %v1269
      %v1300 = vsub.f32 %v1240, %v1270
      %v1301 = vsub.f32 %v1241, %v1271
      %v1302 = vsub.f32 %v1242, %v1272
      %v1303 = vsub.f32 %v1243, %v1273
      %v1304 = vmax.f32 %v1274, 0.0
      %v1305 = vmax.f32 %v1275, 0.0
      %v1306 = vmax.f32 %v1276, 0.0
      %v1307 = vmax.f32 %v1277, 0.0
      %v1308 = vmax.f32 %v1278, 0.0
      %v1309 = vmax.f32 %v1279, 0.0
      %v1310 = vmax.f32 %v1280, 0.0
      %v1311 = vmax.f32 %v1281, 0.0
      %v1312 = vmax.f32 %v1282, 0.0
      %v1313 = vmax.f32 %v1283, 0.0
      %v1314 = vmax.f32 %v1284, 0.0
      %v1315 = vmax.f32 %v1285, 0.0
      %v1316 = vmax.f32 %v1286, 0.0
      %v1317 = vmax.f32 %v1287, 0.0
      %v1318 = vmax.f32 %v1288, 0.0
      %v1319 = vmax.f32 %v1289, 0.0
      %v1320 = vmax.f32 %v1290, 0.0
      %v1321 = vmax.f32 %v1291, 0.0
      %v1322 = vmax.f32 %v1292, 0.0
      %v1323 = vmax.f32 %v1293, 0.0
      %v1324 = vmax.f32 %v1294, 0.0
      %v1325 = vmax.f32 %v1295, 0.0
      %v1326 = vmax.f32 %v1296, 0.0
      %v1327 = vmax.f32 %v1297, 0.0
      %v1328 = vmax.f32 %v1298, 0.0
      %v1329 = vmax.f32 %v1299, 0.0
      %v1330 = vmax.f32 %v1300, 0.0
      %v1331 = vmax.f32 %v1301, 0.0
      %v1332 = vmax.f32 %v1302, 0.0
      %v1333 = vmax.f32 %v1303, 0.0
      %v1334 = vadd.f32 %v1304, 0.001
      %v1335 = vadd.f32 %v1305, 0.001
      %v1336 = vadd.f32 %v1306, 0.001
      %v1337 = vadd.f32 %v1307, 0.001
      %v1338 = vadd.f32 %v1308, 0.001
      %v1339 = vadd.f32 %v1309, 0.001
      %v1340 = vadd.f32 %v1310, 0.001
      %v1341 = vadd.f32 %v1311, 0.001
      %v1342 = vadd.f32 %v1312, 0.001
      %v1343 = vadd.f32 %v1313, 0.001
      %v1344 = vadd.f32 %v1314, 0.001
      %v1345 = vadd.f32 %v1315, 0.001
      %v1346 = vadd.f32 %v1316, 0.001
      %v1347 = vadd.f32 %v1317, 0.001
      %v1348 = vadd.f32 %v1318, 0.001
      %v1349 = vadd.f32 %v1319, 0.001
      %v1350 = vadd.f32 %v1320, 0.001
      %v1351 = vadd.f32 %v1321, 0.001
      %v1352 = vadd.f32 %v1322, 0.001
      %v1353 = vadd.f32 %v1323, 0.001
      %v1354 = vadd.f32 %v1324, 0.001
      %v1355 = vadd.f32 %v1325, 0.001
      %v1356 = vadd.f32 %v1326, 0.001
      %v1357 = vadd.f32 %v1327, 0.001
      %v1358 = vadd.f32 %v1328, 0.001
      %v1359 = vadd.f32 %v1329, 0.001
      %v1360 = vadd.f32 %v1330, 0.001
      %v1361 = vadd.f32 %v1331, 0.001
      %v1362 = vadd.f32 %v1332, 0.001
      %v1363 = vadd.f32 %v1333, 0.001
      %v1364 = vrsqrt.pop %v1334
      %v1365 = vrsqrt.pop %v1335
      %v1366 = vrsqrt.pop %v1336
      %v1367 = vrsqrt.pop %v1337
      %v1368 = vrsqrt.pop %v1338
      %v1369 = vrsqrt.pop %v1339
      %v1370 = vrsqrt.pop %v1340
      %v1371 = vrsqrt.pop %v1341
      %v1372 = vrsqrt.pop %v1342
      %v1373 = vrsqrt.pop %v1343
      %v1374 = vrsqrt.pop %v1344
      %v1375 = vrsqrt.pop %v1345
      %v1376 = vrsqrt.pop %v1346
      %v1377 = vrsqrt.pop %v1347
      %v1378 = vrsqrt.pop %v1348
      %v1379 = vrsqrt.pop %v1349
      %v1380 = vrsqrt.pop %v1350
      %v1381 = vrsqrt.pop %v1351
      %v1382 = vrsqrt.pop %v1352
      %v1383 = vrsqrt.pop %v1353
      %v1384 = vrsqrt.pop %v1354
      %v1385 = vrsqrt.pop %v1355
      %v1386 = vrsqrt.pop %v1356
      %v1387 = vrsqrt.pop %v1357
      %v1388 = vrsqrt.pop %v1358
      %v1389 = vrsqrt.pop %v1359
      %v1390 = vrsqrt.pop %v1360
      %v1391 = vrsqrt.pop %v1361
      %v1392 = vrsqrt.pop %v1362
      %v1393 = vrsqrt.pop %v1363
      %v1394 = vld [vmem:[%s208] sm:$0xff]
      %v1395 = vld [vmem:[%s208 + $0x8] sm:$0xff]
      %v1396 = vld [vmem:[%s208 + $0x10] sm:$0xff]
      %v1397 = vld [vmem:[%s208 + $0x18] sm:$0xff]
      %v1398 = vld [vmem:[%s208 + $0x20] sm:$0xff]
      %v1399 = vld [vmem:[%s208 + $0x28] sm:$0xff]
      %v1400 = vld [vmem:[%s208 + $0x30] sm:$0xff]
      %v1401 = vld [vmem:[%s208 + $0x38] sm:$0xff]
      %v1402 = vld [vmem:[%s208 + $0x40] sm:$0xff]
      %v1403 = vld [vmem:[%s208 + $0x48] sm:$0xff]
      %v1404 = vld [vmem:[%s208 + $0x50] sm:$0xff]
      %v1405 = vld [vmem:[%s208 + $0x58] sm:$0xff]
      %v1406 = vld [vmem:[%s208 + $0x60] sm:$0xff]
      %v1407 = vld [vmem:[%s208 + $0x68] sm:$0xff]
      %v1408 = vld [vmem:[%s208 + $0x70] sm:$0xff]
      %v1409 = vld [vmem:[%s208 + $0x78] sm:$0xff]
      %v1410 = vld [vmem:[%s208 + $0x80] sm:$0xff]
      %v1411 = vld [vmem:[%s208 + $0x88] sm:$0xff]
      %v1412 = vld [vmem:[%s208 + $0x90] sm:$0xff]
      %v1413 = vld [vmem:[%s208 + $0x98] sm:$0xff]
      %v1414 = vld [vmem:[%s208 + $0xa0] sm:$0xff]
      %v1415 = vld [vmem:[%s208 + $0xa8] sm:$0xff]
      %v1416 = vld [vmem:[%s208 + $0xb0] sm:$0xff]
      %v1417 = vld [vmem:[%s208 + $0xb8] sm:$0xff]
      %v1418 = vld [vmem:[%s208 + $0xc0] sm:$0xff]
      %v1419 = vld [vmem:[%s208 + $0xc8] sm:$0xff]
      %v1420 = vld [vmem:[%s208 + $0xd0] sm:$0xff]
      %v1421 = vld [vmem:[%s208 + $0xd8] sm:$0xff]
      %v1422 = vld [vmem:[%s208 + $0xe0] sm:$0xff]
      %v1423 = vld [vmem:[%s208 + $0xe8] sm:$0xff]
      %v1424 = vld [vmem:[%s214] sm:$0xff]
      %v1425 = vld [vmem:[%s214 + $0x8] sm:$0xff]
      %v1426 = vld [vmem:[%s214 + $0x10] sm:$0xff]
      %v1427 = vld [vmem:[%s214 + $0x18] sm:$0xff]
      %v1428 = vld [vmem:[%s214 + $0x20] sm:$0xff]
      %v1429 = vld [vmem:[%s214 + $0x28] sm:$0xff]
      %v1430 = vld [vmem:[%s214 + $0x30] sm:$0xff]
      %v1431 = vld [vmem:[%s214 + $0x38] sm:$0xff]
      %v1432 = vld [vmem:[%s214 + $0x40] sm:$0xff]
      %v1433 = vld [vmem:[%s214 + $0x48] sm:$0xff]
      %v1434 = vld [vmem:[%s214 + $0x50] sm:$0xff]
      %v1435 = vld [vmem:[%s214 + $0x58] sm:$0xff]
      %v1436 = vld [vmem:[%s214 + $0x60] sm:$0xff]
      %v1437 = vld [vmem:[%s214 + $0x68] sm:$0xff]
      %v1438 = vld [vmem:[%s214 + $0x70] sm:$0xff]
      %v1439 = vld [vmem:[%s214 + $0x78] sm:$0xff]
      %v1440 = vld [vmem:[%s214 + $0x80] sm:$0xff]
      %v1441 = vld [vmem:[%s214 + $0x88] sm:$0xff]
      %v1442 = vld [vmem:[%s214 + $0x90] sm:$0xff]
      %v1443 = vld [vmem:[%s214 + $0x98] sm:$0xff]
      %v1444 = vld [vmem:[%s214 + $0xa0] sm:$0xff]
      %v1445 = vld [vmem:[%s214 + $0xa8] sm:$0xff]
      %v1446 = vld [vmem:[%s214 + $0xb0] sm:$0xff]
      %v1447 = vld [vmem:[%s214 + $0xb8] sm:$0xff]
      %v1448 = vld [vmem:[%s214 + $0xc0] sm:$0xff]
      %v1449 = vld [vmem:[%s214 + $0xc8] sm:$0xff]
      %v1450 = vld [vmem:[%s214 + $0xd0] sm:$0xff]
      %v1451 = vld [vmem:[%s214 + $0xd8] sm:$0xff]
      %v1452 = vld [vmem:[%s214 + $0xe0] sm:$0xff]
      %v1453 = vld [vmem:[%s214 + $0xe8] sm:$0xff]
      %v1454 = vmul.f32 %v1364, %v1394
      %v1455 = vmul.f32 %v1365, %v1395
      %v1456 = vmul.f32 %v1366, %v1396
      %v1457 = vmul.f32 %v1367, %v1397
      %v1458 = vmul.f32 %v1368, %v1398
      %v1459 = vmul.f32 %v1369, %v1399
      %v1460 = vmul.f32 %v1370, %v1400
      %v1461 = vmul.f32 %v1371, %v1401
      %v1462 = vmul.f32 %v1372, %v1402
      %v1463 = vmul.f32 %v1373, %v1403
      %v1464 = vmul.f32 %v1374, %v1404
      %v1465 = vmul.f32 %v1375, %v1405
      %v1466 = vmul.f32 %v1376, %v1406
      %v1467 = vmul.f32 %v1377, %v1407
      %v1468 = vmul.f32 %v1378, %v1408
      %v1469 = vmul.f32 %v1379, %v1409
      %v1470 = vmul.f32 %v1380, %v1410
      %v1471 = vmul.f32 %v1381, %v1411
      %v1472 = vmul.f32 %v1382, %v1412
      %v1473 = vmul.f32 %v1383, %v1413
      %v1474 = vmul.f32 %v1384, %v1414
      %v1475 = vmul.f32 %v1385, %v1415
      %v1476 = vmul.f32 %v1386, %v1416
      %v1477 = vmul.f32 %v1387, %v1417
      %v1478 = vmul.f32 %v1388, %v1418
      %v1479 = vmul.f32 %v1389, %v1419
      %v1480 = vmul.f32 %v1390, %v1420
      %v1481 = vmul.f32 %v1391, %v1421
      %v1482 = vmul.f32 %v1392, %v1422
      %v1483 = vmul.f32 %v1393, %v1423
      %v1484 = vmul.f32 %v1184, %v1454
      %v1485 = vmul.f32 %v1185, %v1455
      %v1486 = vmul.f32 %v1186, %v1456
      %v1487 = vmul.f32 %v1187, %v1457
      %v1488 = vmul.f32 %v1188, %v1458
      %v1489 = vmul.f32 %v1189, %v1459
      %v1490 = vmul.f32 %v1190, %v1460
      %v1491 = vmul.f32 %v1191, %v1461
      %v1492 = vmul.f32 %v1192, %v1462
      %v1493 = vmul.f32 %v1193, %v1463
      %v1494 = vmul.f32 %v1194, %v1464
      %v1495 = vmul.f32 %v1195, %v1465
      %v1496 = vmul.f32 %v1196, %v1466
      %v1497 = vmul.f32 %v1197, %v1467
      %v1498 = vmul.f32 %v1198, %v1468
      %v1499 = vmul.f32 %v1199, %v1469
      %v1500 = vmul.f32 %v1200, %v1470
      %v1501 = vmul.f32 %v1201, %v1471
      %v1502 = vmul.f32 %v1202, %v1472
      %v1503 = vmul.f32 %v1203, %v1473
      %v1504 = vmul.f32 %v1204, %v1474
      %v1505 = vmul.f32 %v1205, %v1475
      %v1506 = vmul.f32 %v1206, %v1476
      %v1507 = vmul.f32 %v1207, %v1477
      %v1508 = vmul.f32 %v1208, %v1478
      %v1509 = vmul.f32 %v1209, %v1479
      %v1510 = vmul.f32 %v1210, %v1480
      %v1511 = vmul.f32 %v1211, %v1481
      %v1512 = vmul.f32 %v1212, %v1482
      %v1513 = vmul.f32 %v1213, %v1483
      %v1514 = vsub.f32 %v1424, %v1484
      %v1515 = vsub.f32 %v1425, %v1485
      %v1516 = vsub.f32 %v1426, %v1486
      %v1517 = vsub.f32 %v1427, %v1487
      %v1518 = vsub.f32 %v1428, %v1488
      %v1519 = vsub.f32 %v1429, %v1489
      %v1520 = vsub.f32 %v1430, %v1490
      %v1521 = vsub.f32 %v1431, %v1491
      %v1522 = vsub.f32 %v1432, %v1492
      %v1523 = vsub.f32 %v1433, %v1493
      %v1524 = vsub.f32 %v1434, %v1494
      %v1525 = vsub.f32 %v1435, %v1495
      %v1526 = vsub.f32 %v1436, %v1496
      %v1527 = vsub.f32 %v1437, %v1497
      %v1528 = vsub.f32 %v1438, %v1498
      %v1529 = vsub.f32 %v1439, %v1499
      %v1530 = vsub.f32 %v1440, %v1500
      %v1531 = vsub.f32 %v1441, %v1501
      %v1532 = vsub.f32 %v1442, %v1502
      %v1533 = vsub.f32 %v1443, %v1503
      %v1534 = vsub.f32 %v1444, %v1504
      %v1535 = vsub.f32 %v1445, %v1505
      %v1536 = vsub.f32 %v1446, %v1506
      %v1537 = vsub.f32 %v1447, %v1507
      %v1538 = vsub.f32 %v1448, %v1508
      %v1539 = vsub.f32 %v1449, %v1509
      %v1540 = vsub.f32 %v1450, %v1510
      %v1541 = vsub.f32 %v1451, %v1511
      %v1542 = vsub.f32 %v1452, %v1512
      %v1543 = vsub.f32 %v1453, %v1513
      %1545 = vset.pattern.permute.xlu0 0
      %1546 = vperm.xlu0 %1545, %v1454
      %v1547 = vpop.permute.xlu0 %1546
      %1550 = vset.pattern.permute.xlu0 0
      %1551 = vperm.xlu0 %1550, %v1455
      %v1552 = vpop.permute.xlu0 %1551
      %1555 = vset.pattern.permute.xlu0 0
      %1556 = vperm.xlu0 %1555, %v1456
      %v1557 = vpop.permute.xlu0 %1556
      %1560 = vset.pattern.permute.xlu0 0
      %1561 = vperm.xlu0 %1560, %v1457
      %v1562 = vpop.permute.xlu0 %1561
      %1565 = vset.pattern.permute.xlu0 0
      %1566 = vperm.xlu0 %1565, %v1458
      %v1567 = vpop.permute.xlu0 %1566
      %1570 = vset.pattern.permute.xlu0 0
      %1571 = vperm.xlu0 %1570, %v1459
      %v1572 = vpop.permute.xlu0 %1571
      %1575 = vset.pattern.permute.xlu0 0
      %1576 = vperm.xlu0 %1575, %v1460
      %v1577 = vpop.permute.xlu0 %1576
      %1580 = vset.pattern.permute.xlu0 0
      %1581 = vperm.xlu0 %1580, %v1461
      %v1582 = vpop.permute.xlu0 %1581
      %1585 = vset.pattern.permute.xlu0 0
      %1586 = vperm.xlu0 %1585, %v1462
      %v1587 = vpop.permute.xlu0 %1586
      %1590 = vset.pattern.permute.xlu0 0
      %1591 = vperm.xlu0 %1590, %v1463
      %v1592 = vpop.permute.xlu0 %1591
      %1595 = vset.pattern.permute.xlu0 0
      %1596 = vperm.xlu0 %1595, %v1464
      %v1597 = vpop.permute.xlu0 %1596
      %1600 = vset.pattern.permute.xlu0 0
      %1601 = vperm.xlu0 %1600, %v1465
      %v1602 = vpop.permute.xlu0 %1601
      %1605 = vset.pattern.permute.xlu0 0
      %1606 = vperm.xlu0 %1605, %v1466
      %v1607 = vpop.permute.xlu0 %1606
      %1610 = vset.pattern.permute.xlu0 0
      %1611 = vperm.xlu0 %1610, %v1467
      %v1612 = vpop.permute.xlu0 %1611
      %1615 = vset.pattern.permute.xlu0 0
      %1616 = vperm.xlu0 %1615, %v1468
      %v1617 = vpop.permute.xlu0 %1616
      %1620 = vset.pattern.permute.xlu0 0
      %1621 = vperm.xlu0 %1620, %v1469
      %v1622 = vpop.permute.xlu0 %1621
      %1625 = vset.pattern.permute.xlu0 0
      %1626 = vperm.xlu0 %1625, %v1470
      %v1627 = vpop.permute.xlu0 %1626
      %1630 = vset.pattern.permute.xlu0 0
      %1631 = vperm.xlu0 %1630, %v1471
      %v1632 = vpop.permute.xlu0 %1631
      %1635 = vset.pattern.permute.xlu0 0
      %1636 = vperm.xlu0 %1635, %v1472
      %v1637 = vpop.permute.xlu0 %1636
      %1640 = vset.pattern.permute.xlu0 0
      %1641 = vperm.xlu0 %1640, %v1473
      %v1642 = vpop.permute.xlu0 %1641
      %1645 = vset.pattern.permute.xlu0 0
      %1646 = vperm.xlu0 %1645, %v1474
      %v1647 = vpop.permute.xlu0 %1646
      %1650 = vset.pattern.permute.xlu0 0
      %1651 = vperm.xlu0 %1650, %v1475
      %v1652 = vpop.permute.xlu0 %1651
      %1655 = vset.pattern.permute.xlu0 0
      %1656 = vperm.xlu0 %1655, %v1476
      %v1657 = vpop.permute.xlu0 %1656
      %1660 = vset.pattern.permute.xlu0 0
      %1661 = vperm.xlu0 %1660, %v1477
      %v1662 = vpop.permute.xlu0 %1661
      %1665 = vset.pattern.permute.xlu0 0
      %1666 = vperm.xlu0 %1665, %v1478
      %v1667 = vpop.permute.xlu0 %1666
      %1670 = vset.pattern.permute.xlu0 0
      %1671 = vperm.xlu0 %1670, %v1479
      %v1672 = vpop.permute.xlu0 %1671
      %1675 = vset.pattern.permute.xlu0 0
      %1676 = vperm.xlu0 %1675, %v1480
      %v1677 = vpop.permute.xlu0 %1676
      %1680 = vset.pattern.permute.xlu0 0
      %1681 = vperm.xlu0 %1680, %v1481
      %v1682 = vpop.permute.xlu0 %1681
      %1685 = vset.pattern.permute.xlu0 0
      %1686 = vperm.xlu0 %1685, %v1482
      %v1687 = vpop.permute.xlu0 %1686
      %1690 = vset.pattern.permute.xlu0 0
      %1691 = vperm.xlu0 %1690, %v1483
      %v1692 = vpop.permute.xlu0 %1691
      %v1694 = vmul.f32 %v223, %v1547
      %v1695 = vmul.f32 %v224, %v1547
      %v1696 = vmul.f32 %v225, %v1547
      %v1697 = vmul.f32 %v226, %v1547
      %v1698 = vmul.f32 %v227, %v1547
      %v1699 = vmul.f32 %v228, %v1547
      %v1700 = vmul.f32 %v229, %v1547
      %v1701 = vmul.f32 %v230, %v1552
      %v1702 = vmul.f32 %v231, %v1552
      %v1703 = vmul.f32 %v232, %v1552
      %v1704 = vmul.f32 %v233, %v1552
      %v1705 = vmul.f32 %v234, %v1552
      %v1706 = vmul.f32 %v235, %v1552
      %v1707 = vmul.f32 %v236, %v1552
      %v1708 = vmul.f32 %v237, %v1557
      %v1709 = vmul.f32 %v238, %v1557
      %v1710 = vmul.f32 %v239, %v1557
      %v1711 = vmul.f32 %v240, %v1557
      %v1712 = vmul.f32 %v241, %v1557
      %v1713 = vmul.f32 %v242, %v1557
      %v1714 = vmul.f32 %v243, %v1557
      %v1715 = vmul.f32 %v244, %v1562
      %v1716 = vmul.f32 %v245, %v1562
      %v1717 = vmul.f32 %v246, %v1562
      %v1718 = vmul.f32 %v247, %v1562
      %v1719 = vmul.f32 %v248, %v1562
      %v1720 = vmul.f32 %v249, %v1562
      %v1721 = vmul.f32 %v250, %v1562
      %v1722 = vmul.f32 %v251, %v1567
      %v1723 = vmul.f32 %v252, %v1567
      %v1724 = vmul.f32 %v253, %v1567
      %v1725 = vmul.f32 %v254, %v1567
      %v1726 = vmul.f32 %v255, %v1567
      %v1727 = vmul.f32 %v256, %v1567
      %v1728 = vmul.f32 %v257, %v1567
      %v1729 = vmul.f32 %v258, %v1572
      %v1730 = vmul.f32 %v259, %v1572
      %v1731 = vmul.f32 %v260, %v1572
      %v1732 = vmul.f32 %v261, %v1572
      %v1733 = vmul.f32 %v262, %v1572
      %v1734 = vmul.f32 %v263, %v1572
      %v1735 = vmul.f32 %v264, %v1572
      %v1736 = vmul.f32 %v265, %v1577
      %v1737 = vmul.f32 %v266, %v1577
      %v1738 = vmul.f32 %v267, %v1577
      %v1739 = vmul.f32 %v268, %v1577
      %v1740 = vmul.f32 %v269, %v1577
      %v1741 = vmul.f32 %v270, %v1577
      %v1742 = vmul.f32 %v271, %v1577
      %v1743 = vmul.f32 %v272, %v1582
      %v1744 = vmul.f32 %v273, %v1582
      %v1745 = vmul.f32 %v274, %v1582
      %v1746 = vmul.f32 %v275, %v1582
      %v1747 = vmul.f32 %v276, %v1582
      %v1748 = vmul.f32 %v277, %v1582
      %v1749 = vmul.f32 %v278, %v1582
      %v1750 = vmul.f32 %v279, %v1587
      %v1751 = vmul.f32 %v280, %v1587
      %v1752 = vmul.f32 %v281, %v1587
      %v1753 = vmul.f32 %v282, %v1587
      %v1754 = vmul.f32 %v283, %v1587
      %v1755 = vmul.f32 %v284, %v1587
      %v1756 = vmul.f32 %v285, %v1587
      %v1757 = vmul.f32 %v286, %v1592
      %v1758 = vmul.f32 %v287, %v1592
      %v1759 = vmul.f32 %v288, %v1592
      %v1760 = vmul.f32 %v289, %v1592
      %v1761 = vmul.f32 %v290, %v1592
      %v1762 = vmul.f32 %v291, %v1592
      %v1763 = vmul.f32 %v292, %v1592
      %v1764 = vmul.f32 %v293, %v1597
      %v1765 = vmul.f32 %v294, %v1597
      %v1766 = vmul.f32 %v295, %v1597
      %v1767 = vmul.f32 %v296, %v1597
      %v1768 = vmul.f32 %v297, %v1597
      %v1769 = vmul.f32 %v298, %v1597
      %v1770 = vmul.f32 %v299, %v1597
      %v1771 = vmul.f32 %v300, %v1602
      %v1772 = vmul.f32 %v301, %v1602
      %v1773 = vmul.f32 %v302, %v1602
      %v1774 = vmul.f32 %v303, %v1602
      %v1775 = vmul.f32 %v304, %v1602
      %v1776 = vmul.f32 %v305, %v1602
      %v1777 = vmul.f32 %v306, %v1602
      %v1778 = vmul.f32 %v307, %v1607
      %v1779 = vmul.f32 %v308, %v1607
      %v1780 = vmul.f32 %v309, %v1607
      %v1781 = vmul.f32 %v310, %v1607
      %v1782 = vmul.f32 %v311, %v1607
      %v1783 = vmul.f32 %v312, %v1607
      %v1784 = vmul.f32 %v313, %v1607
      %v1785 = vmul.f32 %v314, %v1612
      %v1786 = vmul.f32 %v315, %v1612
      %v1787 = vmul.f32 %v316, %v1612
      %v1788 = vmul.f32 %v317, %v1612
      %v1789 = vmul.f32 %v318, %v1612
      %v1790 = vmul.f32 %v319, %v1612
      %v1791 = vmul.f32 %v320, %v1612
      %v1792 = vmul.f32 %v321, %v1617
      %v1793 = vmul.f32 %v322, %v1617
      %v1794 = vmul.f32 %v323, %v1617
      %v1795 = vmul.f32 %v324, %v1617
      %v1796 = vmul.f32 %v325, %v1617
      %v1797 = vmul.f32 %v326, %v1617
      %v1798 = vmul.f32 %v327, %v1617
      %v1799 = vmul.f32 %v328, %v1622
      %v1800 = vmul.f32 %v329, %v1622
      %v1801 = vmul.f32 %v330, %v1622
      %v1802 = vmul.f32 %v331, %v1622
      %v1803 = vmul.f32 %v332, %v1622
      %v1804 = vmul.f32 %v333, %v1622
      %v1805 = vmul.f32 %v334, %v1622
      %v1806 = vmul.f32 %v335, %v1627
      %v1807 = vmul.f32 %v336, %v1627
      %v1808 = vmul.f32 %v337, %v1627
      %v1809 = vmul.f32 %v338, %v1627
      %v1810 = vmul.f32 %v339, %v1627
      %v1811 = vmul.f32 %v340, %v1627
      %v1812 = vmul.f32 %v341, %v1627
      %v1813 = vmul.f32 %v342, %v1632
      %v1814 = vmul.f32 %v343, %v1632
      %v1815 = vmul.f32 %v344, %v1632
      %v1816 = vmul.f32 %v345, %v1632
      %v1817 = vmul.f32 %v346, %v1632
      %v1818 = vmul.f32 %v347, %v1632
      %v1819 = vmul.f32 %v348, %v1632
      %v1820 = vmul.f32 %v349, %v1637
      %v1821 = vmul.f32 %v350, %v1637
      %v1822 = vmul.f32 %v351, %v1637
      %v1823 = vmul.f32 %v352, %v1637
      %v1824 = vmul.f32 %v353, %v1637
      %v1825 = vmul.f32 %v354, %v1637
      %v1826 = vmul.f32 %v355, %v1637
      %v1827 = vmul.f32 %v356, %v1642
      %v1828 = vmul.f32 %v357, %v1642
      %v1829 = vmul.f32 %v358, %v1642
      %v1830 = vmul.f32 %v359, %v1642
      %v1831 = vmul.f32 %v360, %v1642
      %v1832 = vmul.f32 %v361, %v1642
      %v1833 = vmul.f32 %v362, %v1642
      %v1834 = vmul.f32 %v363, %v1647
      %v1835 = vmul.f32 %v364, %v1647
      %v1836 = vmul.f32 %v365, %v1647
      %v1837 = vmul.f32 %v366, %v1647
      %v1838 = vmul.f32 %v367, %v1647
      %v1839 = vmul.f32 %v368, %v1647
      %v1840 = vmul.f32 %v369, %v1647
      %v1841 = vmul.f32 %v370, %v1652
      %v1842 = vmul.f32 %v371, %v1652
      %v1843 = vmul.f32 %v372, %v1652
      %v1844 = vmul.f32 %v373, %v1652
      %v1845 = vmul.f32 %v374, %v1652
      %v1846 = vmul.f32 %v375, %v1652
      %v1847 = vmul.f32 %v376, %v1652
      %v1848 = vmul.f32 %v377, %v1657
      %v1849 = vmul.f32 %v378, %v1657
      %v1850 = vmul.f32 %v379, %v1657
      %v1851 = vmul.f32 %v380, %v1657
      %v1852 = vmul.f32 %v381, %v1657
      %v1853 = vmul.f32 %v382, %v1657
      %v1854 = vmul.f32 %v383, %v1657
      %v1855 = vmul.f32 %v384, %v1662
      %v1856 = vmul.f32 %v385, %v1662
      %v1857 = vmul.f32 %v386, %v1662
      %v1858 = vmul.f32 %v387, %v1662
      %v1859 = vmul.f32 %v388, %v1662
      %v1860 = vmul.f32 %v389, %v1662
      %v1861 = vmul.f32 %v390, %v1662
      %v1862 = vmul.f32 %v391, %v1667
      %v1863 = vmul.f32 %v392, %v1667
      %v1864 = vmul.f32 %v393, %v1667
      %v1865 = vmul.f32 %v394, %v1667
      %v1866 = vmul.f32 %v395, %v1667
      %v1867 = vmul.f32 %v396, %v1667
      %v1868 = vmul.f32 %v397, %v1667
      %v1869 = vmul.f32 %v398, %v1672
      %v1870 = vmul.f32 %v399, %v1672
      %v1871 = vmul.f32 %v400, %v1672
      %v1872 = vmul.f32 %v401, %v1672
      %v1873 = vmul.f32 %v402, %v1672
      %v1874 = vmul.f32 %v403, %v1672
      %v1875 = vmul.f32 %v404, %v1672
      %v1876 = vmul.f32 %v405, %v1677
      %v1877 = vmul.f32 %v406, %v1677
      %v1878 = vmul.f32 %v407, %v1677
      %v1879 = vmul.f32 %v408, %v1677
      %v1880 = vmul.f32 %v409, %v1677
      %v1881 = vmul.f32 %v410, %v1677
      %v1882 = vmul.f32 %v411, %v1677
      %v1883 = vmul.f32 %v412, %v1682
      %v1884 = vmul.f32 %v413, %v1682
      %v1885 = vmul.f32 %v414, %v1682
      %v1886 = vmul.f32 %v415, %v1682
      %v1887 = vmul.f32 %v416, %v1682
      %v1888 = vmul.f32 %v417, %v1682
      %v1889 = vmul.f32 %v418, %v1682
      %v1890 = vmul.f32 %v419, %v1687
      %v1891 = vmul.f32 %v420, %v1687
      %v1892 = vmul.f32 %v421, %v1687
      %v1893 = vmul.f32 %v422, %v1687
      %v1894 = vmul.f32 %v423, %v1687
      %v1895 = vmul.f32 %v424, %v1687
      %v1896 = vmul.f32 %v425, %v1687
      %v1897 = vmul.f32 %v426, %v1692
      %v1898 = vmul.f32 %v427, %v1692
      %v1899 = vmul.f32 %v428, %v1692
      %v1900 = vmul.f32 %v429, %v1692
      %v1901 = vmul.f32 %v430, %v1692
      %v1902 = vmul.f32 %v431, %v1692
      %v1903 = vmul.f32 %v432, %v1692
      %1905 = vset.pattern.permute.xlu0 0
      %1906 = vperm.xlu0 %1905, %v1514
      %v1907 = vpop.permute.xlu0 %1906
      %1910 = vset.pattern.permute.xlu0 0
      %1911 = vperm.xlu0 %1910, %v1515
      %v1912 = vpop.permute.xlu0 %1911
      %1915 = vset.pattern.permute.xlu0 0
      %1916 = vperm.xlu0 %1915, %v1516
      %v1917 = vpop.permute.xlu0 %1916
      %1920 = vset.pattern.permute.xlu0 0
      %1921 = vperm.xlu0 %1920, %v1517
      %v1922 = vpop.permute.xlu0 %1921
      %1925 = vset.pattern.permute.xlu0 0
      %1926 = vperm.xlu0 %1925, %v1518
      %v1927 = vpop.permute.xlu0 %1926
      %1930 = vset.pattern.permute.xlu0 0
      %1931 = vperm.xlu0 %1930, %v1519
      %v1932 = vpop.permute.xlu0 %1931
      %1935 = vset.pattern.permute.xlu0 0
      %1936 = vperm.xlu0 %1935, %v1520
      %v1937 = vpop.permute.xlu0 %1936
      %1940 = vset.pattern.permute.xlu0 0
      %1941 = vperm.xlu0 %1940, %v1521
      %v1942 = vpop.permute.xlu0 %1941
      %1945 = vset.pattern.permute.xlu0 0
      %1946 = vperm.xlu0 %1945, %v1522
      %v1947 = vpop.permute.xlu0 %1946
      %1950 = vset.pattern.permute.xlu0 0
      %1951 = vperm.xlu0 %1950, %v1523
      %v1952 = vpop.permute.xlu0 %1951
      %1955 = vset.pattern.permute.xlu0 0
      %1956 = vperm.xlu0 %1955, %v1524
      %v1957 = vpop.permute.xlu0 %1956
      %1960 = vset.pattern.permute.xlu0 0
      %1961 = vperm.xlu0 %1960, %v1525
      %v1962 = vpop.permute.xlu0 %1961
      %1965 = vset.pattern.permute.xlu0 0
      %1966 = vperm.xlu0 %1965, %v1526
      %v1967 = vpop.permute.xlu0 %1966
      %1970 = vset.pattern.permute.xlu0 0
      %1971 = vperm.xlu0 %1970, %v1527
      %v1972 = vpop.permute.xlu0 %1971
      %1975 = vset.pattern.permute.xlu0 0
      %1976 = vperm.xlu0 %1975, %v1528
      %v1977 = vpop.permute.xlu0 %1976
      %1980 = vset.pattern.permute.xlu0 0
      %1981 = vperm.xlu0 %1980, %v1529
      %v1982 = vpop.permute.xlu0 %1981
      %1985 = vset.pattern.permute.xlu0 0
      %1986 = vperm.xlu0 %1985, %v1530
      %v1987 = vpop.permute.xlu0 %1986
      %1990 = vset.pattern.permute.xlu0 0
      %1991 = vperm.xlu0 %1990, %v1531
      %v1992 = vpop.permute.xlu0 %1991
      %1995 = vset.pattern.permute.xlu0 0
      %1996 = vperm.xlu0 %1995, %v1532
      %v1997 = vpop.permute.xlu0 %1996
      %2000 = vset.pattern.permute.xlu0 0
      %2001 = vperm.xlu0 %2000, %v1533
      %v2002 = vpop.permute.xlu0 %2001
      %2005 = vset.pattern.permute.xlu0 0
      %2006 = vperm.xlu0 %2005, %v1534
      %v2007 = vpop.permute.xlu0 %2006
      %2010 = vset.pattern.permute.xlu0 0
      %2011 = vperm.xlu0 %2010, %v1535
      %v2012 = vpop.permute.xlu0 %2011
      %2015 = vset.pattern.permute.xlu0 0
      %2016 = vperm.xlu0 %2015, %v1536
      %v2017 = vpop.permute.xlu0 %2016
      %2020 = vset.pattern.permute.xlu0 0
      %2021 = vperm.xlu0 %2020, %v1537
      %v2022 = vpop.permute.xlu0 %2021
      %2025 = vset.pattern.permute.xlu0 0
      %2026 = vperm.xlu0 %2025, %v1538
      %v2027 = vpop.permute.xlu0 %2026
      %2030 = vset.pattern.permute.xlu0 0
      %2031 = vperm.xlu0 %2030, %v1539
      %v2032 = vpop.permute.xlu0 %2031
      %2035 = vset.pattern.permute.xlu0 0
      %2036 = vperm.xlu0 %2035, %v1540
      %v2037 = vpop.permute.xlu0 %2036
      %2040 = vset.pattern.permute.xlu0 0
      %2041 = vperm.xlu0 %2040, %v1541
      %v2042 = vpop.permute.xlu0 %2041
      %2045 = vset.pattern.permute.xlu0 0
      %2046 = vperm.xlu0 %2045, %v1542
      %v2047 = vpop.permute.xlu0 %2046
      %2050 = vset.pattern.permute.xlu0 0
      %2051 = vperm.xlu0 %2050, %v1543
      %v2052 = vpop.permute.xlu0 %2051
      %v2054 = vadd.f32 %v1694, %v1907
      %v2055 = vadd.f32 %v1695, %v1907
      %v2056 = vadd.f32 %v1696, %v1907
      %v2057 = vadd.f32 %v1697, %v1907
      %v2058 = vadd.f32 %v1698, %v1907
      %v2059 = vadd.f32 %v1699, %v1907
      %v2060 = vadd.f32 %v1700, %v1907
      %v2061 = vadd.f32 %v1701, %v1912
      %v2062 = vadd.f32 %v1702, %v1912
      %v2063 = vadd.f32 %v1703, %v1912
      %v2064 = vadd.f32 %v1704, %v1912
      %v2065 = vadd.f32 %v1705, %v1912
      %v2066 = vadd.f32 %v1706, %v1912
      %v2067 = vadd.f32 %v1707, %v1912
      %v2068 = vadd.f32 %v1708, %v1917
      %v2069 = vadd.f32 %v1709, %v1917
      %v2070 = vadd.f32 %v1710, %v1917
      %v2071 = vadd.f32 %v1711, %v1917
      %v2072 = vadd.f32 %v1712, %v1917
      %v2073 = vadd.f32 %v1713, %v1917
      %v2074 = vadd.f32 %v1714, %v1917
      %v2075 = vadd.f32 %v1715, %v1922
      %v2076 = vadd.f32 %v1716, %v1922
      %v2077 = vadd.f32 %v1717, %v1922
      %v2078 = vadd.f32 %v1718, %v1922
      %v2079 = vadd.f32 %v1719, %v1922
      %v2080 = vadd.f32 %v1720, %v1922
      %v2081 = vadd.f32 %v1721, %v1922
      %v2082 = vadd.f32 %v1722, %v1927
      %v2083 = vadd.f32 %v1723, %v1927
      %v2084 = vadd.f32 %v1724, %v1927
      %v2085 = vadd.f32 %v1725, %v1927
      %v2086 = vadd.f32 %v1726, %v1927
      %v2087 = vadd.f32 %v1727, %v1927
      %v2088 = vadd.f32 %v1728, %v1927
      %v2089 = vadd.f32 %v1729, %v1932
      %v2090 = vadd.f32 %v1730, %v1932
      %v2091 = vadd.f32 %v1731, %v1932
      %v2092 = vadd.f32 %v1732, %v1932
      %v2093 = vadd.f32 %v1733, %v1932
      %v2094 = vadd.f32 %v1734, %v1932
      %v2095 = vadd.f32 %v1735, %v1932
      %v2096 = vadd.f32 %v1736, %v1937
      %v2097 = vadd.f32 %v1737, %v1937
      %v2098 = vadd.f32 %v1738, %v1937
      %v2099 = vadd.f32 %v1739, %v1937
      %v2100 = vadd.f32 %v1740, %v1937
      %v2101 = vadd.f32 %v1741, %v1937
      %v2102 = vadd.f32 %v1742, %v1937
      %v2103 = vadd.f32 %v1743, %v1942
      %v2104 = vadd.f32 %v1744, %v1942
      %v2105 = vadd.f32 %v1745, %v1942
      %v2106 = vadd.f32 %v1746, %v1942
      %v2107 = vadd.f32 %v1747, %v1942
      %v2108 = vadd.f32 %v1748, %v1942
      %v2109 = vadd.f32 %v1749, %v1942
      %v2110 = vadd.f32 %v1750, %v1947
      %v2111 = vadd.f32 %v1751, %v1947
      %v2112 = vadd.f32 %v1752, %v1947
      %v2113 = vadd.f32 %v1753, %v1947
      %v2114 = vadd.f32 %v1754, %v1947
      %v2115 = vadd.f32 %v1755, %v1947
      %v2116 = vadd.f32 %v1756, %v1947
      %v2117 = vadd.f32 %v1757, %v1952
      %v2118 = vadd.f32 %v1758, %v1952
      %v2119 = vadd.f32 %v1759, %v1952
      %v2120 = vadd.f32 %v1760, %v1952
      %v2121 = vadd.f32 %v1761, %v1952
      %v2122 = vadd.f32 %v1762, %v1952
      %v2123 = vadd.f32 %v1763, %v1952
      %v2124 = vadd.f32 %v1764, %v1957
      %v2125 = vadd.f32 %v1765, %v1957
      %v2126 = vadd.f32 %v1766, %v1957
      %v2127 = vadd.f32 %v1767, %v1957
      %v2128 = vadd.f32 %v1768, %v1957
      %v2129 = vadd.f32 %v1769, %v1957
      %v2130 = vadd.f32 %v1770, %v1957
      %v2131 = vadd.f32 %v1771, %v1962
      %v2132 = vadd.f32 %v1772, %v1962
      %v2133 = vadd.f32 %v1773, %v1962
      %v2134 = vadd.f32 %v1774, %v1962
      %v2135 = vadd.f32 %v1775, %v1962
      %v2136 = vadd.f32 %v1776, %v1962
      %v2137 = vadd.f32 %v1777, %v1962
      %v2138 = vadd.f32 %v1778, %v1967
      %v2139 = vadd.f32 %v1779, %v1967
      %v2140 = vadd.f32 %v1780, %v1967
      %v2141 = vadd.f32 %v1781, %v1967
      %v2142 = vadd.f32 %v1782, %v1967
      %v2143 = vadd.f32 %v1783, %v1967
      %v2144 = vadd.f32 %v1784, %v1967
      %v2145 = vadd.f32 %v1785, %v1972
      %v2146 = vadd.f32 %v1786, %v1972
      %v2147 = vadd.f32 %v1787, %v1972
      %v2148 = vadd.f32 %v1788, %v1972
      %v2149 = vadd.f32 %v1789, %v1972
      %v2150 = vadd.f32 %v1790, %v1972
      %v2151 = vadd.f32 %v1791, %v1972
      %v2152 = vadd.f32 %v1792, %v1977
      %v2153 = vadd.f32 %v1793, %v1977
      %v2154 = vadd.f32 %v1794, %v1977
      %v2155 = vadd.f32 %v1795, %v1977
      %v2156 = vadd.f32 %v1796, %v1977
      %v2157 = vadd.f32 %v1797, %v1977
      %v2158 = vadd.f32 %v1798, %v1977
      %v2159 = vadd.f32 %v1799, %v1982
      %v2160 = vadd.f32 %v1800, %v1982
      %v2161 = vadd.f32 %v1801, %v1982
      %v2162 = vadd.f32 %v1802, %v1982
      %v2163 = vadd.f32 %v1803, %v1982
      %v2164 = vadd.f32 %v1804, %v1982
      %v2165 = vadd.f32 %v1805, %v1982
      %v2166 = vadd.f32 %v1806, %v1987
      %v2167 = vadd.f32 %v1807, %v1987
      %v2168 = vadd.f32 %v1808, %v1987
      %v2169 = vadd.f32 %v1809, %v1987
      %v2170 = vadd.f32 %v1810, %v1987
      %v2171 = vadd.f32 %v1811, %v1987
      %v2172 = vadd.f32 %v1812, %v1987
      %v2173 = vadd.f32 %v1813, %v1992
      %v2174 = vadd.f32 %v1814, %v1992
      %v2175 = vadd.f32 %v1815, %v1992
      %v2176 = vadd.f32 %v1816, %v1992
      %v2177 = vadd.f32 %v1817, %v1992
      %v2178 = vadd.f32 %v1818, %v1992
      %v2179 = vadd.f32 %v1819, %v1992
      %v2180 = vadd.f32 %v1820, %v1997
      %v2181 = vadd.f32 %v1821, %v1997
      %v2182 = vadd.f32 %v1822, %v1997
      %v2183 = vadd.f32 %v1823, %v1997
      %v2184 = vadd.f32 %v1824, %v1997
      %v2185 = vadd.f32 %v1825, %v1997
      %v2186 = vadd.f32 %v1826, %v1997
      %v2187 = vadd.f32 %v1827, %v2002
      %v2188 = vadd.f32 %v1828, %v2002
      %v2189 = vadd.f32 %v1829, %v2002
      %v2190 = vadd.f32 %v1830, %v2002
      %v2191 = vadd.f32 %v1831, %v2002
      %v2192 = vadd.f32 %v1832, %v2002
      %v2193 = vadd.f32 %v1833, %v2002
      %v2194 = vadd.f32 %v1834, %v2007
      %v2195 = vadd.f32 %v1835, %v2007
      %v2196 = vadd.f32 %v1836, %v2007
      %v2197 = vadd.f32 %v1837, %v2007
      %v2198 = vadd.f32 %v1838, %v2007
      %v2199 = vadd.f32 %v1839, %v2007
      %v2200 = vadd.f32 %v1840, %v2007
      %v2201 = vadd.f32 %v1841, %v2012
      %v2202 = vadd.f32 %v1842, %v2012
      %v2203 = vadd.f32 %v1843, %v2012
      %v2204 = vadd.f32 %v1844, %v2012
      %v2205 = vadd.f32 %v1845, %v2012
      %v2206 = vadd.f32 %v1846, %v2012
      %v2207 = vadd.f32 %v1847, %v2012
      %v2208 = vadd.f32 %v1848, %v2017
      %v2209 = vadd.f32 %v1849, %v2017
      %v2210 = vadd.f32 %v1850, %v2017
      %v2211 = vadd.f32 %v1851, %v2017
      %v2212 = vadd.f32 %v1852, %v2017
      %v2213 = vadd.f32 %v1853, %v2017
      %v2214 = vadd.f32 %v1854, %v2017
      %v2215 = vadd.f32 %v1855, %v2022
      %v2216 = vadd.f32 %v1856, %v2022
      %v2217 = vadd.f32 %v1857, %v2022
      %v2218 = vadd.f32 %v1858, %v2022
      %v2219 = vadd.f32 %v1859, %v2022
      %v2220 = vadd.f32 %v1860, %v2022
      %v2221 = vadd.f32 %v1861, %v2022
      %v2222 = vadd.f32 %v1862, %v2027
      %v2223 = vadd.f32 %v1863, %v2027
      %v2224 = vadd.f32 %v1864, %v2027
      %v2225 = vadd.f32 %v1865, %v2027
      %v2226 = vadd.f32 %v1866, %v2027
      %v2227 = vadd.f32 %v1867, %v2027
      %v2228 = vadd.f32 %v1868, %v2027
      %v2229 = vadd.f32 %v1869, %v2032
      %v2230 = vadd.f32 %v1870, %v2032
      %v2231 = vadd.f32 %v1871, %v2032
      %v2232 = vadd.f32 %v1872, %v2032
      %v2233 = vadd.f32 %v1873, %v2032
      %v2234 = vadd.f32 %v1874, %v2032
      %v2235 = vadd.f32 %v1875, %v2032
      %v2236 = vadd.f32 %v1876, %v2037
      %v2237 = vadd.f32 %v1877, %v2037
      %v2238 = vadd.f32 %v1878, %v2037
      %v2239 = vadd.f32 %v1879, %v2037
      %v2240 = vadd.f32 %v1880, %v2037
      %v2241 = vadd.f32 %v1881, %v2037
      %v2242 = vadd.f32 %v1882, %v2037
      %v2243 = vadd.f32 %v1883, %v2042
      %v2244 = vadd.f32 %v1884, %v2042
      %v2245 = vadd.f32 %v1885, %v2042
      %v2246 = vadd.f32 %v1886, %v2042
      %v2247 = vadd.f32 %v1887, %v2042
      %v2248 = vadd.f32 %v1888, %v2042
      %v2249 = vadd.f32 %v1889, %v2042
      %v2250 = vadd.f32 %v1890, %v2047
      %v2251 = vadd.f32 %v1891, %v2047
      %v2252 = vadd.f32 %v1892, %v2047
      %v2253 = vadd.f32 %v1893, %v2047
      %v2254 = vadd.f32 %v1894, %v2047
      %v2255 = vadd.f32 %v1895, %v2047
      %v2256 = vadd.f32 %v1896, %v2047
      %v2257 = vadd.f32 %v1897, %v2052
      %v2258 = vadd.f32 %v1898, %v2052
      %v2259 = vadd.f32 %v1899, %v2052
      %v2260 = vadd.f32 %v1900, %v2052
      %v2261 = vadd.f32 %v1901, %v2052
      %v2262 = vadd.f32 %v1902, %v2052
      %v2263 = vadd.f32 %v1903, %v2052
      %2264 = vst [vmem:[%s221] sm:$0xff] %v2054
      %2265 = vst [vmem:[%s221 + $0x8] sm:$0xff] %v2055
      %2266 = vst [vmem:[%s221 + $0x10] sm:$0xff] %v2056
      %2267 = vst [vmem:[%s221 + $0x18] sm:$0xff] %v2057
      %2268 = vst [vmem:[%s221 + $0x20] sm:$0xff] %v2058
      %2269 = vst [vmem:[%s221 + $0x28] sm:$0xff] %v2059
      %2270 = vst.msk [vmem:[%s221 + $0x30] sm:$0xff] %vm438, %v2060
      %2271 = vst [vmem:[%s221 + $0x38] sm:$0xff] %v2061
      %2272 = vst [vmem:[%s221 + $0x40] sm:$0xff] %v2062
      %2273 = vst [vmem:[%s221 + $0x48] sm:$0xff] %v2063
      %2274 = vst [vmem:[%s221 + $0x50] sm:$0xff] %v2064
      %2275 = vst [vmem:[%s221 + $0x58] sm:$0xff] %v2065
      %2276 = vst [vmem:[%s221 + $0x60] sm:$0xff] %v2066
      %2277 = vst.msk [vmem:[%s221 + $0x68] sm:$0xff] %vm438, %v2067
      %2278 = vst [vmem:[%s221 + $0x70] sm:$0xff] %v2068
      %2279 = vst [vmem:[%s221 + $0x78] sm:$0xff] %v2069
      %2280 = vst [vmem:[%s221 + $0x80] sm:$0xff] %v2070
      %2281 = vst [vmem:[%s221 + $0x88] sm:$0xff] %v2071
      %2282 = vst [vmem:[%s221 + $0x90] sm:$0xff] %v2072
      %2283 = vst [vmem:[%s221 + $0x98] sm:$0xff] %v2073
      %2284 = vst.msk [vmem:[%s221 + $0xa0] sm:$0xff] %vm438, %v2074
      %2285 = vst [vmem:[%s221 + $0xa8] sm:$0xff] %v2075
      %2286 = vst [vmem:[%s221 + $0xb0] sm:$0xff] %v2076
      %2287 = vst [vmem:[%s221 + $0xb8] sm:$0xff] %v2077
      %2288 = vst [vmem:[%s221 + $0xc0] sm:$0xff] %v2078
      %2289 = vst [vmem:[%s221 + $0xc8] sm:$0xff] %v2079
      %2290 = vst [vmem:[%s221 + $0xd0] sm:$0xff] %v2080
      %2291 = vst.msk [vmem:[%s221 + $0xd8] sm:$0xff] %vm438, %v2081
      %2292 = vst [vmem:[%s221 + $0xe0] sm:$0xff] %v2082
      %2293 = vst [vmem:[%s221 + $0xe8] sm:$0xff] %v2083
      %2294 = vst [vmem:[%s221 + $0xf0] sm:$0xff] %v2084
      %2295 = vst [vmem:[%s221 + $0xf8] sm:$0xff] %v2085
      %2296 = vst [vmem:[%s221 + $0x100] sm:$0xff] %v2086
      %2297 = vst [vmem:[%s221 + $0x108] sm:$0xff] %v2087
      %2298 = vst.msk [vmem:[%s221 + $0x110] sm:$0xff] %vm438, %v2088
      %2299 = vst [vmem:[%s221 + $0x118] sm:$0xff] %v2089
      %2300 = vst [vmem:[%s221 + $0x120] sm:$0xff] %v2090
      %2301 = vst [vmem:[%s221 + $0x128] sm:$0xff] %v2091
      %2302 = vst [vmem:[%s221 + $0x130] sm:$0xff] %v2092
      %2303 = vst [vmem:[%s221 + $0x138] sm:$0xff] %v2093
      %2304 = vst [vmem:[%s221 + $0x140] sm:$0xff] %v2094
      %2305 = vst.msk [vmem:[%s221 + $0x148] sm:$0xff] %vm438, %v2095
      %2306 = vst [vmem:[%s221 + $0x150] sm:$0xff] %v2096
      %2307 = vst [vmem:[%s221 + $0x158] sm:$0xff] %v2097
      %2308 = vst [vmem:[%s221 + $0x160] sm:$0xff] %v2098
      %2309 = vst [vmem:[%s221 + $0x168] sm:$0xff] %v2099
      %2310 = vst [vmem:[%s221 + $0x170] sm:$0xff] %v2100
      %2311 = vst [vmem:[%s221 + $0x178] sm:$0xff] %v2101
      %2312 = vst.msk [vmem:[%s221 + $0x180] sm:$0xff] %vm438, %v2102
      %2313 = vst [vmem:[%s221 + $0x188] sm:$0xff] %v2103
      %2314 = vst [vmem:[%s221 + $0x190] sm:$0xff] %v2104
      %2315 = vst [vmem:[%s221 + $0x198] sm:$0xff] %v2105
      %2316 = vst [vmem:[%s221 + $0x1a0] sm:$0xff] %v2106
      %2317 = vst [vmem:[%s221 + $0x1a8] sm:$0xff] %v2107
      %2318 = vst [vmem:[%s221 + $0x1b0] sm:$0xff] %v2108
      %2319 = vst.msk [vmem:[%s221 + $0x1b8] sm:$0xff] %vm438, %v2109
      %2320 = vst [vmem:[%s221 + $0x1c0] sm:$0xff] %v2110
      %2321 = vst [vmem:[%s221 + $0x1c8] sm:$0xff] %v2111
      %2322 = vst [vmem:[%s221 + $0x1d0] sm:$0xff] %v2112
      %2323 = vst [vmem:[%s221 + $0x1d8] sm:$0xff] %v2113
      %2324 = vst [vmem:[%s221 + $0x1e0] sm:$0xff] %v2114
      %2325 = vst [vmem:[%s221 + $0x1e8] sm:$0xff] %v2115
      %2326 = vst.msk [vmem:[%s221 + $0x1f0] sm:$0xff] %vm438, %v2116
      %2327 = vst [vmem:[%s221 + $0x1f8] sm:$0xff] %v2117
      %2328 = vst [vmem:[%s221 + $0x200] sm:$0xff] %v2118
      %2329 = vst [vmem:[%s221 + $0x208] sm:$0xff] %v2119
      %2330 = vst [vmem:[%s221 + $0x210] sm:$0xff] %v2120
      %2331 = vst [vmem:[%s221 + $0x218] sm:$0xff] %v2121
      %2332 = vst [vmem:[%s221 + $0x220] sm:$0xff] %v2122
      %2333 = vst.msk [vmem:[%s221 + $0x228] sm:$0xff] %vm438, %v2123
      %2334 = vst [vmem:[%s221 + $0x230] sm:$0xff] %v2124
      %2335 = vst [vmem:[%s221 + $0x238] sm:$0xff] %v2125
      %2336 = vst [vmem:[%s221 + $0x240] sm:$0xff] %v2126
      %2337 = vst [vmem:[%s221 + $0x248] sm:$0xff] %v2127
      %2338 = vst [vmem:[%s221 + $0x250] sm:$0xff] %v2128
      %2339 = vst [vmem:[%s221 + $0x258] sm:$0xff] %v2129
      %2340 = vst.msk [vmem:[%s221 + $0x260] sm:$0xff] %vm438, %v2130
      %2341 = vst [vmem:[%s221 + $0x268] sm:$0xff] %v2131
      %2342 = vst [vmem:[%s221 + $0x270] sm:$0xff] %v2132
      %2343 = vst [vmem:[%s221 + $0x278] sm:$0xff] %v2133
      %2344 = vst [vmem:[%s221 + $0x280] sm:$0xff] %v2134
      %2345 = vst [vmem:[%s221 + $0x288] sm:$0xff] %v2135
      %2346 = vst [vmem:[%s221 + $0x290] sm:$0xff] %v2136
      %2347 = vst.msk [vmem:[%s221 + $0x298] sm:$0xff] %vm438, %v2137
      %2348 = vst [vmem:[%s221 + $0x2a0] sm:$0xff] %v2138
      %2349 = vst [vmem:[%s221 + $0x2a8] sm:$0xff] %v2139
      %2350 = vst [vmem:[%s221 + $0x2b0] sm:$0xff] %v2140
      %2351 = vst [vmem:[%s221 + $0x2b8] sm:$0xff] %v2141
      %2352 = vst [vmem:[%s221 + $0x2c0] sm:$0xff] %v2142
      %2353 = vst [vmem:[%s221 + $0x2c8] sm:$0xff] %v2143
      %2354 = vst.msk [vmem:[%s221 + $0x2d0] sm:$0xff] %vm438, %v2144
      %2355 = vst [vmem:[%s221 + $0x2d8] sm:$0xff] %v2145
      %2356 = vst [vmem:[%s221 + $0x2e0] sm:$0xff] %v2146
      %2357 = vst [vmem:[%s221 + $0x2e8] sm:$0xff] %v2147
      %2358 = vst [vmem:[%s221 + $0x2f0] sm:$0xff] %v2148
      %2359 = vst [vmem:[%s221 + $0x2f8] sm:$0xff] %v2149
      %2360 = vst [vmem:[%s221 + $0x300] sm:$0xff] %v2150
      %2361 = vst.msk [vmem:[%s221 + $0x308] sm:$0xff] %vm438, %v2151
      %2362 = vst [vmem:[%s221 + $0x310] sm:$0xff] %v2152
      %2363 = vst [vmem:[%s221 + $0x318] sm:$0xff] %v2153
      %2364 = vst [vmem:[%s221 + $0x320] sm:$0xff] %v2154
      %2365 = vst [vmem:[%s221 + $0x328] sm:$0xff] %v2155
      %2366 = vst [vmem:[%s221 + $0x330] sm:$0xff] %v2156
      %2367 = vst [vmem:[%s221 + $0x338] sm:$0xff] %v2157
      %2368 = vst.msk [vmem:[%s221 + $0x340] sm:$0xff] %vm438, %v2158
      %2369 = vst [vmem:[%s221 + $0x348] sm:$0xff] %v2159
      %2370 = vst [vmem:[%s221 + $0x350] sm:$0xff] %v2160
      %2371 = vst [vmem:[%s221 + $0x358] sm:$0xff] %v2161
      %2372 = vst [vmem:[%s221 + $0x360] sm:$0xff] %v2162
      %2373 = vst [vmem:[%s221 + $0x368] sm:$0xff] %v2163
      %2374 = vst [vmem:[%s221 + $0x370] sm:$0xff] %v2164
      %2375 = vst.msk [vmem:[%s221 + $0x378] sm:$0xff] %vm438, %v2165
      %2376 = vst [vmem:[%s221 + $0x380] sm:$0xff] %v2166
      %2377 = vst [vmem:[%s221 + $0x388] sm:$0xff] %v2167
      %2378 = vst [vmem:[%s221 + $0x390] sm:$0xff] %v2168
      %2379 = vst [vmem:[%s221 + $0x398] sm:$0xff] %v2169
      %2380 = vst [vmem:[%s221 + $0x3a0] sm:$0xff] %v2170
      %2381 = vst [vmem:[%s221 + $0x3a8] sm:$0xff] %v2171
      %2382 = vst.msk [vmem:[%s221 + $0x3b0] sm:$0xff] %vm438, %v2172
      %2383 = vst [vmem:[%s221 + $0x3b8] sm:$0xff] %v2173
      %2384 = vst [vmem:[%s221 + $0x3c0] sm:$0xff] %v2174
      %2385 = vst [vmem:[%s221 + $0x3c8] sm:$0xff] %v2175
      %2386 = vst [vmem:[%s221 + $0x3d0] sm:$0xff] %v2176
      %2387 = vst [vmem:[%s221 + $0x3d8] sm:$0xff] %v2177
      %2388 = vst [vmem:[%s221 + $0x3e0] sm:$0xff] %v2178
      %2389 = vst.msk [vmem:[%s221 + $0x3e8] sm:$0xff] %vm438, %v2179
      %2390 = vst [vmem:[%s221 + $0x3f0] sm:$0xff] %v2180
      %2391 = vst [vmem:[%s221 + $0x3f8] sm:$0xff] %v2181
      %2392 = vst [vmem:[%s221 + $0x400] sm:$0xff] %v2182
      %2393 = vst [vmem:[%s221 + $0x408] sm:$0xff] %v2183
      %2394 = vst [vmem:[%s221 + $0x410] sm:$0xff] %v2184
      %2395 = vst [vmem:[%s221 + $0x418] sm:$0xff] %v2185
      %2396 = vst.msk [vmem:[%s221 + $0x420] sm:$0xff] %vm438, %v2186
      %2397 = vst [vmem:[%s221 + $0x428] sm:$0xff] %v2187
      %2398 = vst [vmem:[%s221 + $0x430] sm:$0xff] %v2188
      %2399 = vst [vmem:[%s221 + $0x438] sm:$0xff] %v2189
      %2400 = vst [vmem:[%s221 + $0x440] sm:$0xff] %v2190
      %2401 = vst [vmem:[%s221 + $0x448] sm:$0xff] %v2191
      %2402 = vst [vmem:[%s221 + $0x450] sm:$0xff] %v2192
      %2403 = vst.msk [vmem:[%s221 + $0x458] sm:$0xff] %vm438, %v2193
      %2404 = vst [vmem:[%s221 + $0x460] sm:$0xff] %v2194
      %2405 = vst [vmem:[%s221 + $0x468] sm:$0xff] %v2195
      %2406 = vst [vmem:[%s221 + $0x470] sm:$0xff] %v2196
      %2407 = vst [vmem:[%s221 + $0x478] sm:$0xff] %v2197
      %2408 = vst [vmem:[%s221 + $0x480] sm:$0xff] %v2198
      %2409 = vst [vmem:[%s221 + $0x488] sm:$0xff] %v2199
      %2410 = vst.msk [vmem:[%s221 + $0x490] sm:$0xff] %vm438, %v2200
      %2411 = vst [vmem:[%s221 + $0x498] sm:$0xff] %v2201
      %2412 = vst [vmem:[%s221 + $0x4a0] sm:$0xff] %v2202
      %2413 = vst [vmem:[%s221 + $0x4a8] sm:$0xff] %v2203
      %2414 = vst [vmem:[%s221 + $0x4b0] sm:$0xff] %v2204
      %2415 = vst [vmem:[%s221 + $0x4b8] sm:$0xff] %v2205
      %2416 = vst [vmem:[%s221 + $0x4c0] sm:$0xff] %v2206
      %2417 = vst.msk [vmem:[%s221 + $0x4c8] sm:$0xff] %vm438, %v2207
      %2418 = vst [vmem:[%s221 + $0x4d0] sm:$0xff] %v2208
      %2419 = vst [vmem:[%s221 + $0x4d8] sm:$0xff] %v2209
      %2420 = vst [vmem:[%s221 + $0x4e0] sm:$0xff] %v2210
      %2421 = vst [vmem:[%s221 + $0x4e8] sm:$0xff] %v2211
      %2422 = vst [vmem:[%s221 + $0x4f0] sm:$0xff] %v2212
      %2423 = vst [vmem:[%s221 + $0x4f8] sm:$0xff] %v2213
      %2424 = vst.msk [vmem:[%s221 + $0x500] sm:$0xff] %vm438, %v2214
      %2425 = vst [vmem:[%s221 + $0x508] sm:$0xff] %v2215
      %2426 = vst [vmem:[%s221 + $0x510] sm:$0xff] %v2216
      %2427 = vst [vmem:[%s221 + $0x518] sm:$0xff] %v2217
      %2428 = vst [vmem:[%s221 + $0x520] sm:$0xff] %v2218
      %2429 = vst [vmem:[%s221 + $0x528] sm:$0xff] %v2219
      %2430 = vst [vmem:[%s221 + $0x530] sm:$0xff] %v2220
      %2431 = vst.msk [vmem:[%s221 + $0x538] sm:$0xff] %vm438, %v2221
      %2432 = vst [vmem:[%s221 + $0x540] sm:$0xff] %v2222
      %2433 = vst [vmem:[%s221 + $0x548] sm:$0xff] %v2223
      %2434 = vst [vmem:[%s221 + $0x550] sm:$0xff] %v2224
      %2435 = vst [vmem:[%s221 + $0x558] sm:$0xff] %v2225
      %2436 = vst [vmem:[%s221 + $0x560] sm:$0xff] %v2226
      %2437 = vst [vmem:[%s221 + $0x568] sm:$0xff] %v2227
      %2438 = vst.msk [vmem:[%s221 + $0x570] sm:$0xff] %vm438, %v2228
      %2439 = vst [vmem:[%s221 + $0x578] sm:$0xff] %v2229
      %2440 = vst [vmem:[%s221 + $0x580] sm:$0xff] %v2230
      %2441 = vst [vmem:[%s221 + $0x588] sm:$0xff] %v2231
      %2442 = vst [vmem:[%s221 + $0x590] sm:$0xff] %v2232
      %2443 = vst [vmem:[%s221 + $0x598] sm:$0xff] %v2233
      %2444 = vst [vmem:[%s221 + $0x5a0] sm:$0xff] %v2234
      %2445 = vst.msk [vmem:[%s221 + $0x5a8] sm:$0xff] %vm438, %v2235
      %2446 = vst [vmem:[%s221 + $0x5b0] sm:$0xff] %v2236
      %2447 = vst [vmem:[%s221 + $0x5b8] sm:$0xff] %v2237
      %2448 = vst [vmem:[%s221 + $0x5c0] sm:$0xff] %v2238
      %2449 = vst [vmem:[%s221 + $0x5c8] sm:$0xff] %v2239
      %2450 = vst [vmem:[%s221 + $0x5d0] sm:$0xff] %v2240
      %2451 = vst [vmem:[%s221 + $0x5d8] sm:$0xff] %v2241
      %2452 = vst.msk [vmem:[%s221 + $0x5e0] sm:$0xff] %vm438, %v2242
      %2453 = vst [vmem:[%s221 + $0x5e8] sm:$0xff] %v2243
      %2454 = vst [vmem:[%s221 + $0x5f0] sm:$0xff] %v2244
      %2455 = vst [vmem:[%s221 + $0x5f8] sm:$0xff] %v2245
      %2456 = vst [vmem:[%s221 + $0x600] sm:$0xff] %v2246
      %2457 = vst [vmem:[%s221 + $0x608] sm:$0xff] %v2247
      %2458 = vst [vmem:[%s221 + $0x610] sm:$0xff] %v2248
      %2459 = vst.msk [vmem:[%s221 + $0x618] sm:$0xff] %vm438, %v2249
      %2460 = vst [vmem:[%s221 + $0x620] sm:$0xff] %v2250
      %2461 = vst [vmem:[%s221 + $0x628] sm:$0xff] %v2251
      %2462 = vst [vmem:[%s221 + $0x630] sm:$0xff] %v2252
      %2463 = vst [vmem:[%s221 + $0x638] sm:$0xff] %v2253
      %2464 = vst [vmem:[%s221 + $0x640] sm:$0xff] %v2254
      %2465 = vst [vmem:[%s221 + $0x648] sm:$0xff] %v2255
      %2466 = vst.msk [vmem:[%s221 + $0x650] sm:$0xff] %vm438, %v2256
      %2467 = vst [vmem:[%s221 + $0x658] sm:$0xff] %v2257
      %2468 = vst [vmem:[%s221 + $0x660] sm:$0xff] %v2258
      %2469 = vst [vmem:[%s221 + $0x668] sm:$0xff] %v2259
      %2470 = vst [vmem:[%s221 + $0x670] sm:$0xff] %v2260
      %2471 = vst [vmem:[%s221 + $0x678] sm:$0xff] %v2261
      %2472 = vst [vmem:[%s221 + $0x680] sm:$0xff] %v2262
      %2473 = vst.msk [vmem:[%s221 + $0x688] sm:$0xff] %vm438, %v2263
      %s2474 = smul.u32 30, %s14
      %p2475 = scmp.lt.s32.totalorder %s2474, 59
      %s2476 = scalar_select %p2475, %s2474, 59
      %s2477 = smul.addr %s2476, 7
      %s2478 = smul.addr %s2477, 8
      %s2479 = scalar_lea.vmem %s3, %s2478
      // Predicated region
      $region33: #{tpu_custom_call.1} parent=31 // pred_check
        %p2480 = pneg %p110
      $region34: #{tpu_custom_call.1} parent=31 // pred_check_branch
        %2482 = sbr.rel (%p2480) target = $region36
      $region35: #{tpu_custom_call.1} parent=31 // pred_region
        %s2483 = smul.u32 30, %s14
      $region36: #{tpu_custom_call.1} parent=31 // pred_fallthru
        _
    $region32: #{tpu_custom_call.1} parent=5 // pred_fallthru
      _
    %p2484 = scmp.le.s32.totalorder 2, %s9
    // Predicated region
    $region37: #{tpu_custom_call.1} parent=5 // pred_check
      %p2485 = pneg %p2484
    $region38: #{tpu_custom_call.1} parent=5 // pred_check_branch
      %2487 = sbr.rel (%p2485) target = $region40
    $region39: #{tpu_custom_call.1} parent=5 // pred_region
      %s2488 = ssub.s32 %s9, 2
      // Predicated region
      $region41: #{tpu_custom_call.1} parent=39 // pred_check
        %p2489 = pneg %p116
      $region42: #{tpu_custom_call.1} parent=39 // pred_check_branch
        %2491 = sbr.rel (%p2489) target = $region44
      $region43: #{tpu_custom_call.1} parent=39 // pred_region
        %s2492 = smul.u32 30, %s15
        %p2493 = scmp.lt.s32.totalorder %s2492, 59
        %s2494 = scalar_select %p2493, %s2492, 59
        %s2495 = smul.addr %s2494, 7
        %s2496 = smul.addr %s2495, 8
        %s2497 = scalar_lea.vmem %s3, %s2496
      $region44: #{tpu_custom_call.1} parent=39 // pred_fallthru
        _
    $region40: #{tpu_custom_call.1} parent=5 // pred_fallthru
      _
  $region6: #{tpu_custom_call.1} parent=0 // loop_footer
    %s13 = sadd.s32 1, %s9
  $region7: #{tpu_custom_call.1} parent=0 // loop_footer_branch
    %8 = sbr.rel target = $region3
  $region8: #{tpu_custom_call.1} parent=0 // loop_exit
    _

</llo_original>
